<compile_context>
chip_gen: v7x
topology: tpu7x:2x2x1
jax: 0.10.0
libtpu: 0.0.40
codegen_flags: <defaults>
</compile_context>

<pallas_src>
import math
import functools

import jax
import jax.numpy as jnp
from jax import lax
from jax.experimental import pallas as pl
from jax.experimental.pallas import tpu as pltpu


def _round_up(x, m):
    return (x + m - 1) // m * m


def _vmem_limit(blocks, margin=4 << 20, cap=64 << 20):
    """Conservative VMEM budget from (shape, dtype, n_buffers) triples (cap fits v7x)."""
    total = 0
    for shape, dtype, nbuf in blocks:
        total += int(math.prod(shape)) * jnp.dtype(dtype).itemsize * nbuf
    return min(cap, max(8 << 20, int(total * 1.5) + margin))


# ----------------------------------------------------------------------------
# Conv2d, small-C path: tap-packed im2col -> one MXU matmul per tile
# ----------------------------------------------------------------------------
def _conv_packed_kernel(x_ref, w_ref, b_ref, o_ref):
    # x_ref : (1, Kp, TM)  im2col columns (contraction on sublanes, pixel idx on lanes)
    # w_ref : (TO, Kp)     filters (contraction on lanes)
    # b_ref : (TO, 1)      f32 bias
    # o_ref : (1, TO, TM)  NCHW-flat output tile, lane-dense on TM
    acc = jnp.dot(w_ref[...], x_ref[0], preferred_element_type=jnp.float32)  # (TO, TM)
    o_ref[0] = (acc + b_ref[...]).astype(o_ref.dtype)


# ----------------------------------------------------------------------------
# Conv2d, large-C fallback: fused im2col via shifted flat windows
# ----------------------------------------------------------------------------
def _conv_tap_kernel(x_ref, w_ref, b_ref, o_ref, *, shifts, tm):
    # x_ref : (1, P_in, Cp)   resident padded NHWC-flat image of batch n (compute dtype)
    # w_ref : (KH*KW, Cp, TO) per-tap weight matrices
    # b_ref : (1, TO)         f32 bias
    # o_ref : (1, TO, TM)     NCHW-flat output tile
    m0 = pl.multiple_of(pl.program_id(2) * tm, 128)
    acc = None
    for k, s in enumerate(shifts):                       # static unroll over KH*KW taps
        xk = x_ref[0, pl.ds(m0 + s, tm), :]              # direct compute-dtype load
        part = jnp.dot(xk, w_ref[k], preferred_element_type=jnp.float32)
        acc = part if acc is None else acc + part        # value chain; single store below
    res = (acc + b_ref[...]).astype(o_ref.dtype)         # bias add in f32, cast ...
    o_ref[0] = res.T                                     # ... BEFORE the transpose


def conv2d_pallas(x, weight, bias, *, stride=1, padding=0, dilation=1,
                  compute_dtype=jnp.bfloat16, tm_max=256, to_max=256,
                  pack_threshold=256):
    """Conv2d (NCHW in, NCHW out). compute_dtype=jnp.float32 restores full fidelity."""
    N, C, H, W = x.shape
    O, Cw, KH, KW = weight.shape
    assert Cw == C  # TODO(synk): groups != 1 not implemented (module default groups=1)

    Hp, Wp = H + 2 * padding, W + 2 * padding
    OH = (Hp - dilation * (KH - 1) - 1) // stride + 1
    OW = (Wp - dilation * (KW - 1) - 1) // stride + 1
    Kt = C * KH * KW

    to = min(to_max, _round_up(O, 128))
    Op = _round_up(O, to)

    if Kt <= pack_threshold:
        # ---- tap-packed im2col path (small C): HBM blow-up is tiny, MXU fully dense ----
        M = OH * OW
        tm = min(tm_max, _round_up(M, 128))
        Pp = _round_up(M, tm)
        Kp = _round_up(Kt, 128)

        xp = jnp.pad(x, ((0, 0), (0, 0), (padding, padding), (padding, padding)))
        slabs = []
        for kh in range(KH):
            for kw in range(KW):
                h0, w0 = kh * dilation, kw * dilation
                slabs.append(xp[:, :, h0:h0 + (OH - 1) * stride + 1:stride,
                                      w0:w0 + (OW - 1) * stride + 1:stride])  # (N,C,OH,OW)
        # contraction index k = c*KH*KW + kh*KW + kw  (matches weight.reshape(O, Kt))
        cols = jnp.stack(slabs, axis=2).reshape(N, Kt, M)
        cols = jnp.pad(cols, ((0, 0), (0, Kp - Kt), (0, Pp - M))).astype(compute_dtype)

        w2 = jnp.pad(weight.reshape(O, Kt), ((0, Op - O), (0, Kp - Kt))).astype(compute_dtype)
        b2 = jnp.pad(bias, (0, Op - O)).reshape(Op, 1).astype(jnp.float32)

        vmem = _vmem_limit([((1, Kp, tm), compute_dtype, 2),
                            ((to, Kp), compute_dtype, 2),
                            ((to, 1), jnp.float32, 2),
                            ((1, to, tm), x.dtype, 2)])

        out = pl.pallas_call(
            _conv_packed_kernel,
            out_shape=jax.ShapeDtypeStruct((N, Op, Pp), x.dtype),
            grid_spec=pltpu.PrefetchScalarGridSpec(
                num_scalar_prefetch=0,
                grid=(N, Op // to, Pp // tm),
                in_specs=[pl.BlockSpec((1, Kp, tm), lambda n, j, i: (n, 0, i)),
                          pl.BlockSpec((to, Kp), lambda n, j, i: (j, 0)),
                          pl.BlockSpec((to, 1), lambda n, j, i: (j, 0))],
                out_specs=pl.BlockSpec((1, to, tm), lambda n, j, i: (n, j, i)),
            ),
            compiler_params=pltpu.CompilerParams(
                dimension_semantics=("parallel", "parallel", "parallel"),
                vmem_limit_bytes=vmem),
        )(cols, w2, b2)

        return out[:, :O, :M].reshape(N, O, OH, OW)

    # ---- shifted-window fallback (large C): no im2col blow-up in HBM ----
    # TODO(synk): for very large C*Hp*Wp on v7x (64 MiB VMEM) this resident image block
    # should get pipeline_mode=pl.Buffered(1) / spatial tiling with a halo'd manual DMA.
    P_img = Hp * Wp
    tm = min(tm_max, _round_up(P_img, 128))
    Pp = _round_up(P_img, tm)
    Cp = _round_up(C, 128)
    max_shift = (KH - 1) * dilation * Wp + (KW - 1) * dilation
    halo = _round_up(max_shift, 8)
    P_in = Pp + halo

    xp = jnp.pad(x, ((0, 0), (0, 0), (padding, padding), (padding, padding)))
    x_flat = xp.transpose(0, 2, 3, 1).reshape(N, P_img, C)
    x_flat = jnp.pad(x_flat, ((0, 0), (0, P_in - P_img), (0, Cp - C))).astype(compute_dtype)

    w_taps = weight.transpose(2, 3, 1, 0).reshape(KH * KW, C, O)
    w_taps = jnp.pad(w_taps, ((0, 0), (0, Cp - C), (0, Op - O))).astype(compute_dtype)
    b2 = jnp.pad(bias, (0, Op - O)).reshape(1, Op).astype(jnp.float32)

    shifts = tuple(kh * dilation * Wp + kw * dilation
                   for kh in range(KH) for kw in range(KW))

    vmem = _vmem_limit([((1, P_in, Cp), compute_dtype, 2),
                        ((KH * KW, Cp, to), compute_dtype, 2),
                        ((1, to), jnp.float32, 2),
                        ((1, to, tm), x.dtype, 2),
                        ((tm, to), jnp.float32, 2)])      # accumulator headroom

    out = pl.pallas_call(
        functools.partial(_conv_tap_kernel, shifts=shifts, tm=tm),
        out_shape=jax.ShapeDtypeStruct((N, Op, Pp), x.dtype),
        grid_spec=pltpu.PrefetchScalarGridSpec(
            num_scalar_prefetch=0,
            grid=(N, Op // to, Pp // tm),
            in_specs=[pl.BlockSpec((1, P_in, Cp), lambda n, j, i: (n, 0, 0)),
                      pl.BlockSpec((KH * KW, Cp, to), lambda n, j, i: (0, 0, j)),
                      pl.BlockSpec((1, to), lambda n, j, i: (0, j))],
            out_specs=pl.BlockSpec((1, to, tm), lambda n, j, i: (n, j, i)),
        ),
        compiler_params=pltpu.CompilerParams(
            dimension_semantics=("parallel", "parallel", "parallel"),
            vmem_limit_bytes=vmem),
    )(x_flat, w_taps, b2)

    # TODO(synk): stride > 1 on this fallback path computes all stride-1 anchors and
    # subsamples (the packed path above handles stride exactly).
    y = out[:, :O, :P_img].reshape(N, O, Hp, Wp)
    y = y[:, :, 0:(OH - 1) * stride + 1:stride, 0:(OW - 1) * stride + 1:stride]
    return y


# ----------------------------------------------------------------------------
# Thomson loss: one fused kernel (gram accumulation + normalization + arccos +
# half_mhe masking + power('a2') reduction -> scalar)
# ----------------------------------------------------------------------------
_ACOS_COEFFS = (-0.0012624911, 0.0066700901, -0.0170881256, 0.0308918810,
                -0.0501743046, 0.0889789874, -0.2145988016, 1.5707963050)


def _acos_in_kernel(x):
    """arccos from mul/add/sqrt/select (A&S 4.4.46 minimax, |err| ~ 1e-7)."""
    ax = jnp.abs(x)
    p = jnp.full_like(ax, _ACOS_COEFFS[0])
    for c in _ACOS_COEFFS[1:]:
        p = p * ax + c
    r = jnp.sqrt(jnp.maximum(1.0 - ax, 0.0)) * p
    return jnp.where(x < 0.0, math.pi - r, r)


def _thomson_kernel(f_ref, out_ref, gram_ref, *, n_filt, half_mhe):
    k = pl.program_id(0)

    @pl.when(k == 0)
    def _():
        gram_ref[...] = jnp.zeros_like(gram_ref)

    f = f_ref[...]                                                   # (td, Fp) f32
    # TODO(synk): if D ever spans many grid steps, feed f pre-transposed so both
    # dot_general operands contract on their minor dim (single step for typical weights).
    gram_ref[...] += lax.dot_general(f, f, (((0,), (0,)), ((), ())),
                                     preferred_element_type=jnp.float32)

    @pl.when(k == pl.num_programs(0) - 1)
    def _():
        g = gram_ref[...]
        rows = lax.broadcasted_iota(jnp.int32, g.shape, 0)
        cols = lax.broadcasted_iota(jnp.int32, g.shape, 1)
        # Column sum-of-squares == gram diagonal (no per-step ss scratch / reduction).
        diag = jnp.sum(jnp.where(rows == cols, g, 0.0), axis=0, keepdims=True)  # (1, Fp)
        nu = jnp.sqrt(diag) + 0.0001
        nm = lax.dot_general(nu, nu, (((0,), (0,)), ((), ())),
                             preferred_element_type=jnp.float32) + 1e-06
        a = jnp.clip(g / nm, -1.0, 1.0)
        acos = _acos_in_kernel(a)
        base_pos = acos * (1.0 / math.pi) + 0.0001                   # acos(+a)/pi + 1e-4
        base_neg = (math.pi - acos) * (1.0 / math.pi) + 0.0001       # acos(-a)/pi + 1e-4
        f_pos = 1.0 / (base_pos * base_pos)                          # exact (..)**-2
        f_neg = 1.0 / (base_neg * base_neg)

        valid = (rows < n_filt) & (cols < n_filt)
        lower = valid & (cols < rows - 1)     # final - triu(final, -1): keep cols <= rows-2

        def _msum(v, m):
            z = jnp.where(m, v, 0.0)
            return jnp.sum(jnp.sum(z, axis=1, keepdims=True), axis=0, keepdims=True)

        s_pos = _msum(f_pos, lower)
        if half_mhe:
            # filt is (virtually) cat([filt, -filt], dim=1): the masked (2n x 2n) sum
            # decomposes into 2*S_lower(+A) + S_all(-A) - f(-A[0, n-1]).
            s_neg = _msum(f_neg, valid)
            corner = _msum(f_neg, (rows == 0) & (cols == n_filt - 1))
            total = 2.0 * s_pos + s_neg - corner
            n_eff = 2 * n_filt
        else:
            total = s_pos
            n_eff = n_filt
        cnt = n_eff * (n_eff - 1) / 2.0 + 1e-08
        out_ref[...] = total * (0.1 / cnt)                           # power 'a2' scale = 0.1


def thomson_loss_pallas(weight, *, power='a2', model='half_mhe'):
    # TODO(synk): only the module-default power='a2' branch is implemented.
    assert power == 'a2'
    n_filt = weight.shape[0]
    # .view(-1, n_filt) in PyTorch scrambles (O,C,KH,KW) across columns; reshape matches it.
    filt = weight.reshape(-1, n_filt).astype(jnp.float32)
    D = filt.shape[0]
    td = min(_round_up(D, 8), 1024)            # usually a single grid step
    Dp = _round_up(D, td)
    Fp = _round_up(n_filt, 128)
    f_pad = jnp.pad(filt, ((0, Dp - D), (0, Fp - n_filt)))

    out = pl.pallas_call(
        functools.partial(_thomson_kernel, n_filt=n_filt,
                          half_mhe=(model == 'half_mhe')),
        out_shape=jax.ShapeDtypeStruct((1, 1), jnp.float32),
        grid_spec=pltpu.PrefetchScalarGridSpec(
            num_scalar_prefetch=0,
            grid=(Dp // td,),
            in_specs=[pl.BlockSpec((td, Fp), lambda k: (k, 0))],
            out_specs=pl.BlockSpec((1, 1), lambda k: (0, 0)),
            scratch_shapes=[pltpu.VMEM((Fp, Fp), jnp.float32)],
        ),
        compiler_params=pltpu.CompilerParams(dimension_semantics=("arbitrary",)),
    )(f_pad)
    return out[0, 0]


# ----------------------------------------------------------------------------
# ThomsonConvNoFinal.forward
# ----------------------------------------------------------------------------
def thomson_conv_forward(x, weight, bias, *, stride=1, padding=0, dilation=1,
                         power='a2', model='half_mhe', training=True,
                         compute_dtype=jnp.bfloat16):
    y = conv2d_pallas(x, weight, bias, stride=stride, padding=padding,
                      dilation=dilation, compute_dtype=compute_dtype)
    if training:
        thom = thomson_loss_pallas(weight, power=power, model=model)
    else:
        thom = jnp.float32(0.0)
    return y, thom


# ----------------------------------------------------------------------------
# Pure-JAX references (sanity check only)
# ----------------------------------------------------------------------------
def _conv_ref(x, weight, bias, dtype=jnp.float32, precision=None):
    y = lax.conv_general_dilated(
        x.astype(dtype), weight.astype(dtype),
        window_strides=(1, 1), padding=[(0, 0), (0, 0)],
        dimension_numbers=('NCHW', 'OIHW', 'NCHW'),
        preferred_element_type=jnp.float32, precision=precision)
    return y + bias[None, :, None, None].astype(jnp.float32)


def _thomson_ref(weight, power='a2', model='half_mhe'):
    n_filt = weight.shape[0]
    filt = weight.reshape(-1, n_filt).astype(jnp.float32)
    if model == 'half_mhe':
        filt = jnp.concatenate([filt, -filt], axis=1)
        n_filt = 2 * n_filt
    filt_norm = jnp.sqrt(jnp.sum(filt * filt, axis=0, keepdims=True)) + 0.0001
    norm_mat = filt_norm.T @ filt_norm + 1e-06
    inner = (filt.T @ filt) / norm_mat
    acos = jnp.arccos(inner) / math.pi + 0.0001
    final = acos ** -2.0
    final = final - jnp.triu(final, -1)
    cnt = n_filt * (n_filt - 1) / 2.0 + 1e-08
    return 0.1 * final.sum() / cnt


if __name__ == "__main__":
    key = jax.random.PRNGKey(0)
    kx, kw, kb = jax.random.split(key, 3)

    N, C, H, W = 2, 4, 16, 16
    O, KH, KW = 8, 3, 3

    x = jax.random.normal(kx, (N, C, H, W), jnp.float32)
    # torch.nn.init.normal_(self.conv.weight): std-normal weights
    weight = jax.random.normal(kw, (O, C, KH, KW), jnp.float32)
    # PyTorch Conv2d default bias init: U(-1/sqrt(fan_in), 1/sqrt(fan_in))
    bound = 1.0 / math.sqrt(C * KH * KW)
    bias = jax.random.uniform(kb, (O,), jnp.float32, -bound, bound)

    fwd = jax.jit(functools.partial(thomson_conv_forward, stride=1, padding=0,
                                    dilation=1, power='a2', model='half_mhe',
                                    training=True))
    y, thom = fwd(x, weight, bias)
    jax.block_until_ready((y, thom))

    assert y.shape == (N, O, H - KH + 1, W - KW + 1)

    # Conv: tight check vs an XLA conv using the same bf16 operands / f32 accumulation...
    y_ref_bf16 = _conv_ref(x, weight, bias, dtype=jnp.bfloat16)
    assert jnp.allclose(y, y_ref_bf16, rtol=1e-2, atol=1e-2), "conv mismatch (bf16 ref)"
    # ...and a loose check vs the full-f32 conv (covers bf16 rounding of the operands).
    y_ref_f32 = _conv_ref(x, weight, bias, dtype=jnp.float32,
                          precision=lax.Precision.HIGHEST)
    assert jnp.allclose(y, y_ref_f32, rtol=5e-2, atol=1e-1), "conv mismatch (f32 ref)"

    thom_ref = _thomson_ref(weight, power='a2', model='half_mhe')
    assert jnp.allclose(thom, thom_ref, rtol=5e-3, atol=1e-4), "thomson loss mismatch"

    print("KERNEL_OK")
</pallas_src>

<mosaic_0001>
module attributes {stable_mosaic.version = 11 : i64} {
  func.func @_conv_packed_kernel(%arg0: i32, %arg1: i32, %arg2: i32, %arg3: memref<1x128x256xbf16, #tpu.memory_space<vmem>>, %arg4: memref<128x128xbf16, #tpu.memory_space<vmem>>, %arg5: memref<128x1xf32, #tpu.memory_space<vmem>>, %arg6: memref<1x128x256xf32, #tpu.memory_space<vmem>>) attributes {dimension_semantics = [#tpu.dimension_semantics<parallel>, #tpu.dimension_semantics<parallel>, #tpu.dimension_semantics<parallel>], iteration_bounds = array<i64: 2, 1, 1>, scalar_prefetch = 0 : i64, scratch_operands = 0 : i64, tpu.core_type = #tpu.core_type<tc>, window_params = [{transform_indices = @transform_0, window_bounds = array<i64: 1, 128, 256>}, {transform_indices = @transform_1, window_bounds = array<i64: 128, 128>}, {transform_indices = @transform_2, window_bounds = array<i64: 128, 1>}, {transform_indices = @transform_3, window_bounds = array<i64: 1, 128, 256>}]} {
    %c0 = arith.constant 0 : index
    %c0_0 = arith.constant 0 : index
    %0 = vector.load %arg4[%c0, %c0_0] : memref<128x128xbf16, #tpu.memory_space<vmem>>, vector<128x128xbf16>
    %c0_1 = arith.constant 0 : index
    %c0_2 = arith.constant 0 : index
    %c0_3 = arith.constant 0 : index
    %1 = vector.load %arg3[%c0_1, %c0_2, %c0_3] : memref<1x128x256xbf16, #tpu.memory_space<vmem>>, vector<1x128x256xbf16>
    %2 = vector.shape_cast %1 : vector<1x128x256xbf16> to vector<128x256xbf16>
    %cst = arith.constant dense<0.000000e+00> : vector<128x256xf32>
    %3 = tpu.matmul %0, %2, %cst {dimension_numbers = #tpu.dot_dimension_numbers<[1], [0], [0], [1], [0, 0, 1, 1], [], []>} : vector<128x128xbf16>, vector<128x256xbf16>, vector<128x256xf32> -> vector<128x256xf32>
    %c0_4 = arith.constant 0 : index
    %c0_5 = arith.constant 0 : index
    %4 = vector.load %arg5[%c0_4, %c0_5] : memref<128x1xf32, #tpu.memory_space<vmem>>, vector<128x1xf32>
    %5 = vector.broadcast %4 : vector<128x1xf32> to vector<128x256xf32>
    %6 = arith.addf %3, %5 : vector<128x256xf32>
    %c0_6 = arith.constant 0 : index
    %c0_7 = arith.constant 0 : index
    %c0_8 = arith.constant 0 : index
    %7 = vector.load %arg6[%c0_6, %c0_7, %c0_8] : memref<1x128x256xf32, #tpu.memory_space<vmem>>, vector<1x128x256xf32>
    %8 = vector.shape_cast %7 : vector<1x128x256xf32> to vector<128x256xf32>
    %9 = vector.shape_cast %6 : vector<128x256xf32> to vector<1x128x256xf32>
    tpu.vector_store %arg6[%c0_6, %c0_7, %c0_8], %9 {strides = array<i32>} : memref<1x128x256xf32, #tpu.memory_space<vmem>>, vector<1x128x256xf32>,
    return
  }
  func.func @transform_0(%arg0: i32, %arg1: i32, %arg2: i32) -> (i32, i32, i32) {
    %c0_i32 = arith.constant 0 : i32
    %c0_i32_0 = arith.constant 0 : i32
    return %arg0, %c0_i32, %arg2 : i32, i32, i32
  }
  func.func @transform_1(%arg0: i32, %arg1: i32, %arg2: i32) -> (i32, i32) {
    %c0_i32 = arith.constant 0 : i32
    %c0_i32_0 = arith.constant 0 : i32
    return %arg1, %c0_i32 : i32, i32
  }
  func.func @transform_2(%arg0: i32, %arg1: i32, %arg2: i32) -> (i32, i32) {
    %c0_i32 = arith.constant 0 : i32
    %c0_i32_0 = arith.constant 0 : i32
    return %arg1, %c0_i32 : i32, i32
  }
  func.func @transform_3(%arg0: i32, %arg1: i32, %arg2: i32) -> (i32, i32, i32) {
    %c0_i32 = arith.constant 0 : i32
    return %arg0, %arg1, %arg2 : i32, i32, i32
  }
}

module attributes {stable_mosaic.version = 11 : i64} {
  func.func @_thomson_kernel(%arg0: i32, %arg1: memref<40x128xf32, #tpu.memory_space<vmem>>, %arg2: memref<1x1xf32, #tpu.memory_space<vmem>>, %arg3: memref<128x128xf32, #tpu.memory_space<vmem>>) attributes {dimension_semantics = [#tpu.dimension_semantics<arbitrary>], iteration_bounds = array<i64: 1>, scalar_prefetch = 0 : i64, scratch_operands = 1 : i64, tpu.core_type = #tpu.core_type<tc>, window_params = [{transform_indices = @transform_0, window_bounds = array<i64: 40, 128>}, {pipeline_mode = #tpu.pipeline_mode<synchronous>, transform_indices = @transform_1, window_bounds = array<i64: 1, 1>}]} {
    %c0_i32 = arith.constant 0 : i32
    %0 = arith.cmpi eq, %arg0, %c0_i32 : i32
    %1 = arith.extui %0 : i1 to i32
    %c0_i32_0 = arith.constant 0 : i32
    %2 = arith.cmpi ne, %1, %c0_i32_0 : i32
    scf.if %2 {
      %cst_8 = arith.constant 0.000000e+00 : f32
      %11 = vector.broadcast %cst_8 : f32 to vector<128x128xf32>
      %c0_9 = arith.constant 0 : index
      %c0_10 = arith.constant 0 : index
      %12 = vector.load %arg3[%c0_9, %c0_10] : memref<128x128xf32, #tpu.memory_space<vmem>>, vector<128x128xf32>
      tpu.vector_store %arg3[%c0_9, %c0_10], %11 {strides = array<i32>} : memref<128x128xf32, #tpu.memory_space<vmem>>, vector<128x128xf32>,
    } else {
    }
    %c0 = arith.constant 0 : index
    %c0_1 = arith.constant 0 : index
    %3 = vector.load %arg1[%c0, %c0_1] : memref<40x128xf32, #tpu.memory_space<vmem>>, vector<40x128xf32>
    %c0_2 = arith.constant 0 : index
    %c0_3 = arith.constant 0 : index
    %4 = vector.load %arg3[%c0_2, %c0_3] : memref<128x128xf32, #tpu.memory_space<vmem>>, vector<128x128xf32>
    %cst = arith.constant dense<0.000000e+00> : vector<128x128xf32>
    %5 = tpu.matmul %3, %3, %cst {dimension_numbers = #tpu.dot_dimension_numbers<[0], [0], [1], [1], [0, 1, 1, 1], [], []>} : vector<40x128xf32>, vector<40x128xf32>, vector<128x128xf32> -> vector<128x128xf32>
    %6 = arith.addf %4, %5 : vector<128x128xf32>
    %c0_4 = arith.constant 0 : index
    %c0_5 = arith.constant 0 : index
    %7 = vector.load %arg3[%c0_4, %c0_5] : memref<128x128xf32, #tpu.memory_space<vmem>>, vector<128x128xf32>
    tpu.vector_store %arg3[%c0_4, %c0_5], %6 {strides = array<i32>} : memref<128x128xf32, #tpu.memory_space<vmem>>, vector<128x128xf32>,
    %c0_i32_6 = arith.constant 0 : i32
    %8 = arith.cmpi eq, %arg0, %c0_i32_6 : i32
    %9 = arith.extui %8 : i1 to i32
    %c0_i32_7 = arith.constant 0 : i32
    %10 = arith.cmpi ne, %9, %c0_i32_7 : i32
    scf.if %10 {
      %c0_8 = arith.constant 0 : index
      %c0_9 = arith.constant 0 : index
      %11 = vector.load %arg3[%c0_8, %c0_9] : memref<128x128xf32, #tpu.memory_space<vmem>>, vector<128x128xf32>
      %12 = tpu.iota {dimensions = array<i32: 0>} : vector<128x128xi32>
      %13 = tpu.iota {dimensions = array<i32: 1>} : vector<128x128xi32>
      %14 = arith.cmpi eq, %12, %13 : vector<128x128xi32>
      %cst_10 = arith.constant 0.000000e+00 : f32
      %15 = vector.broadcast %cst_10 : f32 to vector<128x128xf32>
      %16 = arith.select %14, %11, %15 : vector<128x128xi1>, vector<128x128xf32>
      %cst_11 = arith.constant dense<0.000000e+00> : vector<128xf32>
      %17 = vector.multi_reduction <add>, %16, %cst_11 [0] : vector<128x128xf32> to vector<128xf32>
      %18 = vector.shape_cast %17 : vector<128xf32> to vector<1x128xf32>
      %19 = math.sqrt %18 : vector<1x128xf32>
      %cst_12 = arith.constant 9.99999974E-5 : f32
      %20 = vector.broadcast %cst_12 : f32 to vector<1x128xf32>
      %21 = arith.addf %19, %20 : vector<1x128xf32>
      %cst_13 = arith.constant dense<0.000000e+00> : vector<128x128xf32>
      %22 = tpu.matmul %21, %21, %cst_13 {dimension_numbers = #tpu.dot_dimension_numbers<[0], [0], [1], [1], [0, 1, 1, 1], [], []>} : vector<1x128xf32>, vector<1x128xf32>, vector<128x128xf32> -> vector<128x128xf32>
      %cst_14 = arith.constant 9.99999997E-7 : f32
      %23 = vector.broadcast %cst_14 : f32 to vector<128x128xf32>
      %24 = arith.addf %22, %23 : vector<128x128xf32>
      %25 = arith.divf %11, %24 : vector<128x128xf32>
      %cst_15 = arith.constant -1.000000e+00 : f32
      %cst_16 = arith.constant 1.000000e+00 : f32
      %26 = vector.broadcast %cst_15 : f32 to vector<128x128xf32>
      %27 = arith.maximumf %26, %25 : vector<128x128xf32>
      %28 = vector.broadcast %cst_16 : f32 to vector<128x128xf32>
      %29 = arith.minimumf %28, %27 : vector<128x128xf32>
      %30 = math.absf %29 : vector<128x128xf32>
      %cst_17 = arith.constant -0.0012624911 : f32
      %31 = vector.broadcast %cst_17 : f32 to vector<128x128xf32>
      %32 = arith.mulf %31, %30 : vector<128x128xf32>
      %cst_18 = arith.constant 6.670090e-03 : f32
      %33 = vector.broadcast %cst_18 : f32 to vector<128x128xf32>
      %34 = arith.addf %32, %33 : vector<128x128xf32>
      %35 = arith.mulf %34, %30 : vector<128x128xf32>
      %cst_19 = arith.constant -0.0170881264 : f32
      %36 = vector.broadcast %cst_19 : f32 to vector<128x128xf32>
      %37 = arith.addf %35, %36 : vector<128x128xf32>
      %38 = arith.mulf %37, %30 : vector<128x128xf32>
      %cst_20 = arith.constant 0.0308918804 : f32
      %39 = vector.broadcast %cst_20 : f32 to vector<128x128xf32>
      %40 = arith.addf %38, %39 : vector<128x128xf32>
      %41 = arith.mulf %40, %30 : vector<128x128xf32>
      %cst_21 = arith.constant -0.0501743034 : f32
      %42 = vector.broadcast %cst_21 : f32 to vector<128x128xf32>
      %43 = arith.addf %41, %42 : vector<128x128xf32>
      %44 = arith.mulf %43, %30 : vector<128x128xf32>
      %cst_22 = arith.constant 0.0889789909 : f32
      %45 = vector.broadcast %cst_22 : f32 to vector<128x128xf32>
      %46 = arith.addf %44, %45 : vector<128x128xf32>
      %47 = arith.mulf %46, %30 : vector<128x128xf32>
      %cst_23 = arith.constant -0.214598805 : f32
      %48 = vector.broadcast %cst_23 : f32 to vector<128x128xf32>
      %49 = arith.addf %47, %48 : vector<128x128xf32>
      %50 = arith.mulf %49, %30 : vector<128x128xf32>
      %cst_24 = arith.constant 1.57079625 : f32
      %51 = vector.broadcast %cst_24 : f32 to vector<128x128xf32>
      %52 = arith.addf %50, %51 : vector<128x128xf32>
      %cst_25 = arith.constant 1.000000e+00 : f32
      %53 = vector.broadcast %cst_25 : f32 to vector<128x128xf32>
      %54 = arith.subf %53, %30 : vector<128x128xf32>
      %cst_26 = arith.constant 0.000000e+00 : f32
      %55 = vector.broadcast %cst_26 : f32 to vector<128x128xf32>
      %56 = arith.maximumf %54, %55 : vector<128x128xf32>
      %57 = math.sqrt %56 : vector<128x128xf32>
      %58 = arith.mulf %57, %52 : vector<128x128xf32>
      %cst_27 = arith.constant 0.000000e+00 : f32
      %59 = vector.broadcast %cst_27 : f32 to vector<128x128xf32>
      %60 = arith.cmpf olt, %29, %59 : vector<128x128xf32>
      %cst_28 = arith.constant 3.14159274 : f32
      %61 = vector.broadcast %cst_28 : f32 to vector<128x128xf32>
      %62 = arith.subf %61, %58 : vector<128x128xf32>
      %63 = arith.select %60, %62, %58 : vector<128x128xi1>, vector<128x128xf32>
      %cst_29 = arith.constant 0.318309873 : f32
      %64 = vector.broadcast %cst_29 : f32 to vector<128x128xf32>
      %65 = arith.mulf %63, %64 : vector<128x128xf32>
      %cst_30 = arith.constant 9.99999974E-5 : f32
      %66 = vector.broadcast %cst_30 : f32 to vector<128x128xf32>
      %67 = arith.addf %65, %66 : vector<128x128xf32>
      %cst_31 = arith.constant 3.14159274 : f32
      %68 = vector.broadcast %cst_31 : f32 to vector<128x128xf32>
      %69 = arith.subf %68, %63 : vector<128x128xf32>
      %cst_32 = arith.constant 0.318309873 : f32
      %70 = vector.broadcast %cst_32 : f32 to vector<128x128xf32>
      %71 = arith.mulf %69, %70 : vector<128x128xf32>
      %cst_33 = arith.constant 9.99999974E-5 : f32
      %72 = vector.broadcast %cst_33 : f32 to vector<128x128xf32>
      %73 = arith.addf %71, %72 : vector<128x128xf32>
      %74 = arith.mulf %67, %67 : vector<128x128xf32>
      %cst_34 = arith.constant 1.000000e+00 : f32
      %75 = vector.broadcast %cst_34 : f32 to vector<128x128xf32>
      %76 = arith.divf %75, %74 : vector<128x128xf32>
      %77 = arith.mulf %73, %73 : vector<128x128xf32>
      %cst_35 = arith.constant 1.000000e+00 : f32
      %78 = vector.broadcast %cst_35 : f32 to vector<128x128xf32>
      %79 = arith.divf %78, %77 : vector<128x128xf32>
      %c8_i32 = arith.constant 8 : i32
      %80 = vector.broadcast %c8_i32 : i32 to vector<128x128xi32>
      %81 = arith.cmpi slt, %12, %80 : vector<128x128xi32>
      %c8_i32_36 = arith.constant 8 : i32
      %82 = vector.broadcast %c8_i32_36 : i32 to vector<128x128xi32>
      %83 = arith.cmpi slt, %13, %82 : vector<128x128xi32>
      %84 = arith.andi %81, %83 : vector<128x128xi1>
      %c1_i32 = arith.constant 1 : i32
      %85 = vector.broadcast %c1_i32 : i32 to vector<128x128xi32>
      %86 = arith.subi %12, %85 : vector<128x128xi32>
      %87 = arith.cmpi slt, %13, %86 : vector<128x128xi32>
      %88 = arith.andi %84, %87 : vector<128x128xi1>
      %cst_37 = arith.constant 0.000000e+00 : f32
      %89 = vector.broadcast %cst_37 : f32 to vector<128x128xf32>
      %90 = arith.select %88, %76, %89 : vector<128x128xi1>, vector<128x128xf32>
      %cst_38 = arith.constant dense<0.000000e+00> : vector<128xf32>
      %91 = vector.multi_reduction <add>, %90, %cst_38 [1] : vector<128x128xf32> to vector<128xf32>
      %92 = vector.shape_cast %91 : vector<128xf32> to vector<128x1xf32>
      %cst_39 = arith.constant dense<0.000000e+00> : vector<1xf32>
      %93 = vector.multi_reduction <add>, %92, %cst_39 [0] : vector<128x1xf32> to vector<1xf32>
      %94 = vector.shape_cast %93 : vector<1xf32> to vector<1x1xf32>
      %cst_40 = arith.constant 0.000000e+00 : f32
      %95 = vector.broadcast %cst_40 : f32 to vector<128x128xf32>
      %96 = arith.select %84, %79, %95 : vector<128x128xi1>, vector<128x128xf32>
      %cst_41 = arith.constant dense<0.000000e+00> : vector<128xf32>
      %97 = vector.multi_reduction <add>, %96, %cst_41 [1] : vector<128x128xf32> to vector<128xf32>
      %98 = vector.shape_cast %97 : vector<128xf32> to vector<128x1xf32>
      %cst_42 = arith.constant dense<0.000000e+00> : vector<1xf32>
      %99 = vector.multi_reduction <add>, %98, %cst_42 [0] : vector<128x1xf32> to vector<1xf32>
      %100 = vector.shape_cast %99 : vector<1xf32> to vector<1x1xf32>
      %c0_i32_43 = arith.constant 0 : i32
      %101 = vector.broadcast %c0_i32_43 : i32 to vector<128x128xi32>
      %102 = arith.cmpi eq, %12, %101 : vector<128x128xi32>
      %c7_i32 = arith.constant 7 : i32
      %103 = vector.broadcast %c7_i32 : i32 to vector<128x128xi32>
      %104 = arith.cmpi eq, %13, %103 : vector<128x128xi32>
      %105 = arith.andi %102, %104 : vector<128x128xi1>
      %cst_44 = arith.constant 0.000000e+00 : f32
      %106 = vector.broadcast %cst_44 : f32 to vector<128x128xf32>
      %107 = arith.select %105, %79, %106 : vector<128x128xi1>, vector<128x128xf32>
      %cst_45 = arith.constant dense<0.000000e+00> : vector<128xf32>
      %108 = vector.multi_reduction <add>, %107, %cst_45 [1] : vector<128x128xf32> to vector<128xf32>
      %109 = vector.shape_cast %108 : vector<128xf32> to vector<128x1xf32>
      %cst_46 = arith.constant dense<0.000000e+00> : vector<1xf32>
      %110 = vector.multi_reduction <add>, %109, %cst_46 [0] : vector<128x1xf32> to vector<1xf32>
      %111 = vector.shape_cast %110 : vector<1xf32> to vector<1x1xf32>
      %cst_47 = arith.constant 2.000000e+00 : f32
      %112 = vector.broadcast %cst_47 : f32 to vector<1x1xf32>
      %113 = arith.mulf %112, %94 : vector<1x1xf32>
      %114 = arith.addf %113, %100 : vector<1x1xf32>
      %115 = arith.subf %114, %111 : vector<1x1xf32>
      %cst_48 = arith.constant 8.33333353E-4 : f32
      %116 = vector.broadcast %cst_48 : f32 to vector<1x1xf32>
      %117 = arith.mulf %115, %116 : vector<1x1xf32>
      %c0_49 = arith.constant 0 : index
      %c0_50 = arith.constant 0 : index
      %118 = vector.load %arg2[%c0_49, %c0_50] : memref<1x1xf32, #tpu.memory_space<vmem>>, vector<1x1xf32>
      tpu.vector_store %arg2[%c0_49, %c0_50], %117 {strides = array<i32>} : memref<1x1xf32, #tpu.memory_space<vmem>>, vector<1x1xf32>,
    } else {
    }
    return
  }
  func.func @transform_0(%arg0: i32) -> (i32, i32) {
    %c0_i32 = arith.constant 0 : i32
    %c0_i32_0 = arith.constant 0 : i32
    return %arg0, %c0_i32 : i32, i32
  }
  func.func @transform_1(%arg0: i32) -> (i32, i32) {
    %c0_i32 = arith.constant 0 : i32
    %c0_i32_0 = arith.constant 0 : i32
    %c0_i32_1 = arith.constant 0 : i32
    return %c0_i32, %c0_i32_0 : i32, i32
  }
}

</mosaic_0001>

<llo_original>
// kernel: thomson_conv_forward.2
$region0: #{thomson_conv_forward.2}
  #allocation0 [shape = 'u32[]', space=smem, size = 0x4, offset = 0x4, fixed_abs, tag = 'smem constant byte address 0x4 - core index']
  #allocation1 [shape = 'u32[144,128]{1,0:T(1,128)}', space=vmem, size = 0x12000, scoped, tag = 'internal scratch']
  %s0 = inlined_call_operand.vmem [shape: bf16[2,128,256], index: 0, kind: input, shape index: {}]
  %s1 = inlined_call_operand.vmem [shape: bf16[128,128], index: 1, kind: input, shape index: {}]
  %s2 = inlined_call_operand.vmem [shape: f32[128,1], index: 2, kind: input, shape index: {}]
  %s3 = inlined_call_operand.vmem [shape: f32[2,128,256], index: 3, kind: output, shape index: {}]
  %s4 = sld [smem:[#allocation0]]
  $region45: #{thomson_conv_forward.2} parent=0
    _
  %s6 = ssub.s32 1, %s4
  %s7 = scalar_select 0, %s6, %s4
  loop: start=0, step=1, limit=4
  $region2: #{thomson_conv_forward.2} parent=0 // loop_pre_header
    _
  $region3: #{thomson_conv_forward.2} parent=0 // loop_header
    %s9 = sphi 0, %s13
    %p10 = scmp.ge.s32.totalorder %s9, 4
    %s16 = sphi 0, %s35
    %s17 = sphi 0, %s31
    %s18 = sphi 0, %s27
    %s19 = sphi 0, %s16
    %s20 = sphi 0, %s17
    %s21 = sphi 0, %s18
    %s22 = sphi 0, %s19
    %s23 = sphi 0, %s20
    %s24 = sphi 0, %s21
    %s40 = sphi 0, %s42
    %s43 = sphi 0, %s40
    %s44 = sphi 0, %s43
    %s60 = sphi 0, %s44
    %s66 = sphi 0, %s68
    %s69 = sphi 0, %s66
    %s70 = sphi 0, %s69
    %s86 = sphi 0, %s70
    %s92 = sphi 0, %s94
    %s95 = sphi 0, %s92
    %s96 = sphi 0, %s95
    %s112 = sphi 0, %s96
    %s122 = sphi 0, %s124
    %s125 = sphi 0, %s122
    %s126 = sphi 0, %s125
    %s142 = sphi 0, %s126
  $region4: #{thomson_conv_forward.2} parent=0 // loop_header_branch
    %12 = sbr.rel (%p10) target = $region8
  $region5: #{thomson_conv_forward.2} parent=0 // loop_body
    %s14 = ssub.s32 %s9, 1
    %s15 = ssub.s32 %s9, 2
    %s25 = sadd.s32 1, %s18
    %p26 = scmp.ge.s32.totalorder %s25, 1
    %s27 = scalar_select %p26, 0, %s25
    %s28 = sadd.s32 1, %s17
    %s29 = scalar_select %p26, %s28, %s17
    %p30 = scmp.ge.s32.totalorder %s29, 1
    %s31 = scalar_select %p30, 0, %s29
    %s32 = sadd.s32 1, %s16
    %s33 = scalar_select %p30, %s32, %s16
    %p34 = scmp.ge.s32.totalorder %s33, 2
    %s35 = scalar_select %p34, 0, %s33
    %s36 = ssub.s32 %s16, %s35
    %s37 = ssub.s32 %s18, %s27
    %s38 = sor.u32 %s36, %s37
    %p39 = scmp.eq.s32.totalorder %s38, 0
    %s41 = sadd.s32 %s40, 1
    %s42 = scalar_select %p39, %s40, %s41
    %p45 = pneg %p39
    %p46 = scmp.eq.s32.totalorder %s9, 1
    %p47 = por %p45, %p46
    %p48 = scmp.ne.s32.totalorder %s40, %s43
    %p49 = scmp.eq.s32.totalorder %s9, 0
    %p50 = por %p48, %p49
    %p51 = scmp.ne.s32.totalorder %s40, %s43
    %p52 = scmp.eq.s32.totalorder %s14, 1
    %p53 = por %p51, %p52
    %p54 = scmp.ne.s32.totalorder %s43, %s44
    %p55 = scmp.eq.s32.totalorder %s14, 0
    %p56 = por %p54, %p55
    %p57 = scmp.ne.s32.totalorder %s43, %s44
    %p58 = scmp.eq.s32.totalorder %s15, 1
    %p59 = por %p57, %p58
    %p61 = scmp.ne.s32.totalorder %s44, %s60
    %p62 = scmp.eq.s32.totalorder %s15, 0
    %p63 = por %p61, %p62
    %s64 = ssub.s32 %s17, %s31
    %p65 = scmp.eq.s32.totalorder %s64, 0
    %s67 = sadd.s32 %s66, 1
    %s68 = scalar_select %p65, %s66, %s67
    %p71 = pneg %p65
    %p72 = scmp.eq.s32.totalorder %s9, 1
    %p73 = por %p71, %p72
    %p74 = scmp.ne.s32.totalorder %s66, %s69
    %p75 = scmp.eq.s32.totalorder %s9, 0
    %p76 = por %p74, %p75
    %p77 = scmp.ne.s32.totalorder %s66, %s69
    %p78 = scmp.eq.s32.totalorder %s14, 1
    %p79 = por %p77, %p78
    %p80 = scmp.ne.s32.totalorder %s69, %s70
    %p81 = scmp.eq.s32.totalorder %s14, 0
    %p82 = por %p80, %p81
    %p83 = scmp.ne.s32.totalorder %s69, %s70
    %p84 = scmp.eq.s32.totalorder %s15, 1
    %p85 = por %p83, %p84
    %p87 = scmp.ne.s32.totalorder %s70, %s86
    %p88 = scmp.eq.s32.totalorder %s15, 0
    %p89 = por %p87, %p88
    %s90 = ssub.s32 %s17, %s31
    %p91 = scmp.eq.s32.totalorder %s90, 0
    %s93 = sadd.s32 %s92, 1
    %s94 = scalar_select %p91, %s92, %s93
    %p97 = pneg %p91
    %p98 = scmp.eq.s32.totalorder %s9, 1
    %p99 = por %p97, %p98
    %p100 = scmp.ne.s32.totalorder %s92, %s95
    %p101 = scmp.eq.s32.totalorder %s9, 0
    %p102 = por %p100, %p101
    %p103 = scmp.ne.s32.totalorder %s92, %s95
    %p104 = scmp.eq.s32.totalorder %s14, 1
    %p105 = por %p103, %p104
    %p106 = scmp.ne.s32.totalorder %s95, %s96
    %p107 = scmp.eq.s32.totalorder %s14, 0
    %p108 = por %p106, %p107
    %p109 = scmp.ne.s32.totalorder %s95, %s96
    %p110 = scmp.eq.s32.totalorder %s15, 1
    %p111 = por %p109, %p110
    %p113 = scmp.ne.s32.totalorder %s96, %s112
    %p114 = scmp.eq.s32.totalorder %s15, 0
    %p115 = por %p113, %p114
    %s116 = ssub.s32 %s16, %s35
    %s117 = ssub.s32 %s17, %s31
    %s118 = sor.u32 %s116, %s117
    %s119 = ssub.s32 %s18, %s27
    %s120 = sor.u32 %s118, %s119
    %p121 = scmp.eq.s32.totalorder %s120, 0
    %s123 = sadd.s32 %s122, 1
    %s124 = scalar_select %p121, %s122, %s123
    %p127 = pneg %p121
    %p128 = scmp.eq.s32.totalorder %s9, 1
    %p129 = por %p127, %p128
    %p130 = scmp.ne.s32.totalorder %s122, %s125
    %p131 = scmp.eq.s32.totalorder %s9, 0
    %p132 = por %p130, %p131
    %p133 = scmp.ne.s32.totalorder %s122, %s125
    %p134 = scmp.eq.s32.totalorder %s14, 1
    %p135 = por %p133, %p134
    %p136 = scmp.ne.s32.totalorder %s125, %s126
    %p137 = scmp.eq.s32.totalorder %s14, 0
    %p138 = por %p136, %p137
    %p139 = scmp.ne.s32.totalorder %s125, %s126
    %p140 = scmp.eq.s32.totalorder %s15, 1
    %p141 = por %p139, %p140
    %p143 = scmp.ne.s32.totalorder %s126, %s142
    %p144 = scmp.eq.s32.totalorder %s15, 0
    %p145 = por %p143, %p144
    %p146 = scmp.le.s32.totalorder 1, %s9
    %p147 = scmp.lt.s32.totalorder %s9, 3
    %p148 = pnand %p146, %p147
    %p149 = pneg %p148
    // Predicated region
    $region9: #{thomson_conv_forward.2} parent=5 // pred_check
      _
    $region10: #{thomson_conv_forward.2} parent=5 // pred_check_branch
      %151 = sbr.rel (%p148) target = $region12
    $region11: #{thomson_conv_forward.2} parent=5 // pred_region
      %s152 = ssub.s32 %s9, 1
      // Predicated region
      $region13: #{thomson_conv_forward.2} parent=11 // pred_check
        %p153 = pneg %p82
      $region14: #{thomson_conv_forward.2} parent=11 // pred_check_branch
        %155 = sbr.rel (%p153) target = $region16
      $region15: #{thomson_conv_forward.2} parent=11 // pred_region
        %s156 = smul.u32 16, %s20
        %p157 = scmp.lt.s32.totalorder %s156, 15
        %s158 = scalar_select %p157, %s156, 15
        %s159 = smul.addr %s158, 4
        %s160 = scalar_lea.vmem %s1, %s159
        %s161 = smul.u32 16, %s20
      $region16: #{thomson_conv_forward.2} parent=11 // pred_fallthru
        _
      // Predicated region
      $region17: #{thomson_conv_forward.2} parent=11 // pred_check
        %p162 = pneg %p108
      $region18: #{thomson_conv_forward.2} parent=11 // pred_check_branch
        %164 = sbr.rel (%p162) target = $region20
      $region19: #{thomson_conv_forward.2} parent=11 // pred_region
        %s165 = smul.u32 16, %s20
        %p166 = scmp.lt.s32.totalorder %s165, 15
        %s167 = scalar_select %p166, %s165, 15
        %s168 = smul.addr %s167, 8
        %s169 = scalar_lea.vmem %s2, %s168
        %s170 = smul.u32 16, %s20
      $region20: #{thomson_conv_forward.2} parent=11 // pred_fallthru
        _
    $region12: #{thomson_conv_forward.2} parent=5 // pred_fallthru
      _
    %p171 = scmp.lt.s32.totalorder %s9, 2
    // Predicated region
    $region21: #{thomson_conv_forward.2} parent=5 // pred_check
      %p172 = pneg %p171
    $region22: #{thomson_conv_forward.2} parent=5 // pred_check_branch
      %174 = sbr.rel (%p172) target = $region24
    $region23: #{thomson_conv_forward.2} parent=5 // pred_region
      // Predicated region
      $region25: #{thomson_conv_forward.2} parent=23 // pred_check
        %p175 = pneg %p50
      $region26: #{thomson_conv_forward.2} parent=23 // pred_check_branch
        %177 = sbr.rel (%p175) target = $region28
      $region27: #{thomson_conv_forward.2} parent=23 // pred_region
        %s178 = smul.u32 2, %s18
        %p179 = scmp.lt.s32.totalorder %s16, 1
        %s180 = scalar_select %p179, %s16, 1
        %p181 = scmp.lt.s32.totalorder %s178, 1
        %s182 = scalar_select %p181, %s178, 1
        %s183 = smul.addr %s180, 32
        %s184 = sadd.s32 %s182, %s183
        %s185 = smul.addr %s184, 4
        %s186 = scalar_lea.vmem %s0, %s185
        %s187 = smul.u32 2, %s18
      $region28: #{thomson_conv_forward.2} parent=23 // pred_fallthru
        _
    $region24: #{thomson_conv_forward.2} parent=5 // pred_fallthru
      _
    %p188 = scmp.le.s32.totalorder 1, %s9
    %p189 = scmp.lt.s32.totalorder %s9, 3
    %p190 = pnand %p188, %p189
    %p191 = pneg %p190
    // Predicated region
    $region29: #{thomson_conv_forward.2} parent=5 // pred_check
      _
    $region30: #{thomson_conv_forward.2} parent=5 // pred_check_branch
      %193 = sbr.rel (%p190) target = $region32
    $region31: #{thomson_conv_forward.2} parent=5 // pred_region
      %s194 = ssub.s32 %s9, 1
      %s195 = smul.u32 2, %s21
      %p196 = scmp.lt.s32.totalorder %s19, 1
      %s197 = scalar_select %p196, %s19, 1
      %p198 = scmp.lt.s32.totalorder %s195, 1
      %s199 = scalar_select %p198, %s195, 1
      %s200 = smul.addr %s197, 32
      %s201 = sadd.s32 %s199, %s200
      %s202 = smul.addr %s201, 4
      %s203 = scalar_lea.vmem %s0, %s202
      %p204 = pneg %p56
      %p205 = pneg %p53
      %s206 = smul.u32 16, %s20
      %p207 = scmp.lt.s32.totalorder %s206, 15
      %s208 = scalar_select %p207, %s206, 15
      %s209 = smul.addr %s208, 4
      %s210 = scalar_lea.vmem %s1, %s209
      %p211 = pneg %p82
      %p212 = pneg %p79
      %s213 = smul.u32 16, %s20
      %p214 = scmp.lt.s32.totalorder %s213, 15
      %s215 = scalar_select %p214, %s213, 15
      %s216 = smul.addr %s215, 8
      %s217 = scalar_lea.vmem %s2, %s216
      %p218 = pneg %p108
      %p219 = pneg %p105
      %p220 = pneg %p138
      %p221 = pneg %p135
      %s222 = smul.u32 16, %s20
      %s223 = smul.u32 2, %s21
      %p224 = scmp.lt.s32.totalorder %s19, 1
      %s225 = scalar_select %p224, %s19, 1
      %p226 = scmp.lt.s32.totalorder %s222, 15
      %s227 = scalar_select %p226, %s222, 15
      %p228 = scmp.lt.s32.totalorder %s223, 1
      %s229 = scalar_select %p228, %s223, 1
      %s230 = smul.addr %s227, 2
      %s231 = sadd.s32 %s229, %s230
      %s232 = smul.addr %s225, 32
      %s233 = sadd.s32 %s231, %s232
      %s234 = smul.addr %s233, 8
      %s235 = scalar_lea.vmem %s3, %s234
      %s236 = smul.u32 2, %s21
      %p237 = scmp.lt.s32.totalorder %s19, 1
      %s238 = scalar_select %p237, %s19, 1
      %p239 = scmp.lt.s32.totalorder %s236, 1
      %s240 = scalar_select %p239, %s236, 1
      %s241 = smul.addr %s238, 32
      %s242 = sadd.s32 %s240, %s241
      %s243 = smul.addr %s242, 4
      %s244 = scalar_lea.vmem %s0, %s243
      %s245 = smul.u32 2, %s21
      %s246 = smul.u32 16, %s20
      %p247 = scmp.lt.s32.totalorder %s246, 15
      %s248 = scalar_select %p247, %s246, 15
      %s249 = smul.addr %s248, 4
      %s250 = scalar_lea.vmem %s1, %s249
      %s251 = smul.u32 16, %s20
      %s252 = smul.u32 16, %s20
      %p253 = scmp.lt.s32.totalorder %s252, 15
      %s254 = scalar_select %p253, %s252, 15
      %s255 = smul.addr %s254, 8
      %s256 = scalar_lea.vmem %s2, %s255
      %s257 = smul.u32 16, %s20
      %s258 = smul.u32 16, %s20
      %s259 = smul.u32 2, %s21
      %p260 = scmp.lt.s32.totalorder %s19, 1
      %s261 = scalar_select %p260, %s19, 1
      %p262 = scmp.lt.s32.totalorder %s258, 15
      %s263 = scalar_select %p262, %s258, 15
      %p264 = scmp.lt.s32.totalorder %s259, 1
      %s265 = scalar_select %p264, %s259, 1
      %s266 = smul.addr %s263, 2
      %s267 = sadd.s32 %s265, %s266
      %s268 = smul.addr %s261, 32
      %s269 = sadd.s32 %s267, %s268
      %s270 = smul.addr %s269, 8
      %s271 = scalar_lea.vmem %s3, %s270
      %s272 = smul.u32 16, %s20
      %s273 = smul.u32 2, %s21
      %v275 = vld [vmem:[%s250] sm:$0xf]
      %v276 = vld [vmem:[%s250 + $0x4] sm:$0xf]
      %v277 = vld [vmem:[%s250 + $0x8] sm:$0xf]
      %v278 = vld [vmem:[%s250 + $0xc] sm:$0xf]
      %v279 = vld [vmem:[%s250 + $0x10] sm:$0xf]
      %v280 = vld [vmem:[%s250 + $0x14] sm:$0xf]
      %v281 = vld [vmem:[%s250 + $0x18] sm:$0xf]
      %v282 = vld [vmem:[%s250 + $0x1c] sm:$0xf]
      %v283 = vld [vmem:[%s250 + $0x20] sm:$0xf]
      %v284 = vld [vmem:[%s250 + $0x24] sm:$0xf]
      %v285 = vld [vmem:[%s250 + $0x28] sm:$0xf]
      %v286 = vld [vmem:[%s250 + $0x2c] sm:$0xf]
      %v287 = vld [vmem:[%s250 + $0x30] sm:$0xf]
      %v288 = vld [vmem:[%s250 + $0x34] sm:$0xf]
      %v289 = vld [vmem:[%s250 + $0x38] sm:$0xf]
      %v290 = vld [vmem:[%s250 + $0x3c] sm:$0xf]
      %v291 = vld [vmem:[%s244] sm:$0xff]
      %v292 = vld [vmem:[%s244 + $0x8] sm:$0xff]
      %v293 = vld [vmem:[%s244 + $0x10] sm:$0xff]
      %v294 = vld [vmem:[%s244 + $0x18] sm:$0xff]
      %v295 = vld [vmem:[%s244 + $0x20] sm:$0xff]
      %v296 = vld [vmem:[%s244 + $0x28] sm:$0xff]
      %v297 = vld [vmem:[%s244 + $0x30] sm:$0xff]
      %v298 = vld [vmem:[%s244 + $0x38] sm:$0xff]
      %v299 = vld [vmem:[%s244 + $0x40] sm:$0xff]
      %v300 = vld [vmem:[%s244 + $0x48] sm:$0xff]
      %v301 = vld [vmem:[%s244 + $0x50] sm:$0xff]
      %v302 = vld [vmem:[%s244 + $0x58] sm:$0xff]
      %v303 = vld [vmem:[%s244 + $0x60] sm:$0xff]
      %v304 = vld [vmem:[%s244 + $0x68] sm:$0xff]
      %v305 = vld [vmem:[%s244 + $0x70] sm:$0xff]
      %v306 = vld [vmem:[%s244 + $0x78] sm:$0xff]
      %v307 = vld [vmem:[%s256] sm:$0xff]
      %v308 = vld [vmem:[%s256 + $0x8] sm:$0xff]
      %v309 = vld [vmem:[%s256 + $0x10] sm:$0xff]
      %v310 = vld [vmem:[%s256 + $0x18] sm:$0xff]
      %v311 = vld [vmem:[%s256 + $0x20] sm:$0xff]
      %v312 = vld [vmem:[%s256 + $0x28] sm:$0xff]
      %v313 = vld [vmem:[%s256 + $0x30] sm:$0xff]
      %v314 = vld [vmem:[%s256 + $0x38] sm:$0xff]
      %v315 = vld [vmem:[%s256 + $0x40] sm:$0xff]
      %v316 = vld [vmem:[%s256 + $0x48] sm:$0xff]
      %v317 = vld [vmem:[%s256 + $0x50] sm:$0xff]
      %v318 = vld [vmem:[%s256 + $0x58] sm:$0xff]
      %v319 = vld [vmem:[%s256 + $0x60] sm:$0xff]
      %v320 = vld [vmem:[%s256 + $0x68] sm:$0xff]
      %v321 = vld [vmem:[%s256 + $0x70] sm:$0xff]
      %v322 = vld [vmem:[%s256 + $0x78] sm:$0xff]
      %324 = vset.pattern.permute.xlu0 0
      %325 = vperm.xlu0 %324, %v307
      %v326 = vpop.permute.xlu0 %325
      %329 = vset.pattern.permute.xlu0 0
      %330 = vperm.xlu0 %329, %v308
      %v331 = vpop.permute.xlu0 %330
      %334 = vset.pattern.permute.xlu0 0
      %335 = vperm.xlu0 %334, %v309
      %v336 = vpop.permute.xlu0 %335
      %339 = vset.pattern.permute.xlu0 0
      %340 = vperm.xlu0 %339, %v310
      %v341 = vpop.permute.xlu0 %340
      %344 = vset.pattern.permute.xlu0 0
      %345 = vperm.xlu0 %344, %v311
      %v346 = vpop.permute.xlu0 %345
      %349 = vset.pattern.permute.xlu0 0
      %350 = vperm.xlu0 %349, %v312
      %v351 = vpop.permute.xlu0 %350
      %354 = vset.pattern.permute.xlu0 0
      %355 = vperm.xlu0 %354, %v313
      %v356 = vpop.permute.xlu0 %355
      %359 = vset.pattern.permute.xlu0 0
      %360 = vperm.xlu0 %359, %v314
      %v361 = vpop.permute.xlu0 %360
      %364 = vset.pattern.permute.xlu0 0
      %365 = vperm.xlu0 %364, %v315
      %v366 = vpop.permute.xlu0 %365
      %369 = vset.pattern.permute.xlu0 0
      %370 = vperm.xlu0 %369, %v316
      %v371 = vpop.permute.xlu0 %370
      %374 = vset.pattern.permute.xlu0 0
      %375 = vperm.xlu0 %374, %v317
      %v376 = vpop.permute.xlu0 %375
      %379 = vset.pattern.permute.xlu0 0
      %380 = vperm.xlu0 %379, %v318
      %v381 = vpop.permute.xlu0 %380
      %384 = vset.pattern.permute.xlu0 0
      %385 = vperm.xlu0 %384, %v319
      %v386 = vpop.permute.xlu0 %385
      %389 = vset.pattern.permute.xlu0 0
      %390 = vperm.xlu0 %389, %v320
      %v391 = vpop.permute.xlu0 %390
      %394 = vset.pattern.permute.xlu0 0
      %395 = vperm.xlu0 %394, %v321
      %v396 = vpop.permute.xlu0 %395
      %399 = vset.pattern.permute.xlu0 0
      %400 = vperm.xlu0 %399, %v322
      %v401 = vpop.permute.xlu0 %400
      %v419 = vunpack.c.l.b16 %v275
      %v420 = vunpack.c.l.b16 %v276
      %v421 = vunpack.c.l.b16 %v277
      %v422 = vunpack.c.l.b16 %v278
      %v423 = vunpack.c.l.b16 %v279
      %v424 = vunpack.c.l.b16 %v280
      %v425 = vunpack.c.l.b16 %v281
      %v426 = vunpack.c.l.b16 %v282
      %v427 = vunpack.c.l.b16 %v283
      %v428 = vunpack.c.l.b16 %v284
      %v429 = vunpack.c.l.b16 %v285
      %v430 = vunpack.c.l.b16 %v286
      %v431 = vunpack.c.l.b16 %v287
      %v432 = vunpack.c.l.b16 %v288
      %v433 = vunpack.c.l.b16 %v289
      %v434 = vunpack.c.l.b16 %v290
      %v435 = vpack.c.b16 %v420, %v419
      %v436 = vpack.c.b16 %v422, %v421
      %v437 = vpack.c.b16 %v424, %v423
      %v438 = vpack.c.b16 %v426, %v425
      %v439 = vpack.c.b16 %v428, %v427
      %v440 = vpack.c.b16 %v430, %v429
      %v441 = vpack.c.b16 %v432, %v431
      %v442 = vpack.c.b16 %v434, %v433
      %v467 = vunpack.c.l.b16 %v291
      %v468 = vunpack.c.h.b16 %v291
      %v469 = vunpack.c.l.b16 %v292
      %v470 = vunpack.c.h.b16 %v292
      %v471 = vunpack.c.l.b16 %v293
      %v472 = vunpack.c.h.b16 %v293
      %v473 = vunpack.c.l.b16 %v294
      %v474 = vunpack.c.h.b16 %v294
      %v475 = vunpack.c.l.b16 %v295
      %v476 = vunpack.c.h.b16 %v295
      %v477 = vunpack.c.l.b16 %v296
      %v478 = vunpack.c.h.b16 %v296
      %v479 = vunpack.c.l.b16 %v297
      %v480 = vunpack.c.h.b16 %v297
      %v481 = vunpack.c.l.b16 %v298
      %v482 = vunpack.c.h.b16 %v298
      %v483 = vunpack.c.l.b16 %v299
      %v484 = vunpack.c.h.b16 %v299
      %v485 = vunpack.c.l.b16 %v300
      %v486 = vunpack.c.h.b16 %v300
      %v487 = vunpack.c.l.b16 %v301
      %v488 = vunpack.c.h.b16 %v301
      %v489 = vunpack.c.l.b16 %v302
      %v490 = vunpack.c.h.b16 %v302
      %v491 = vunpack.c.l.b16 %v303
      %v492 = vunpack.c.h.b16 %v303
      %v493 = vunpack.c.l.b16 %v304
      %v494 = vunpack.c.h.b16 %v304
      %v495 = vunpack.c.l.b16 %v305
      %v496 = vunpack.c.h.b16 %v305
      %v497 = vunpack.c.l.b16 %v306
      %v498 = vunpack.c.h.b16 %v306
      %v499 = vpack.c.b16 %v469, %v467
      %v500 = vpack.c.b16 %v470, %v468
      %v501 = vpack.c.b16 %v473, %v471
      %v502 = vpack.c.b16 %v474, %v472
      %v503 = vpack.c.b16 %v477, %v475
      %v504 = vpack.c.b16 %v478, %v476
      %v505 = vpack.c.b16 %v481, %v479
      %v506 = vpack.c.b16 %v482, %v480
      %v507 = vpack.c.b16 %v485, %v483
      %v508 = vpack.c.b16 %v486, %v484
      %v509 = vpack.c.b16 %v489, %v487
      %v510 = vpack.c.b16 %v490, %v488
      %v511 = vpack.c.b16 %v493, %v491
      %v512 = vpack.c.b16 %v494, %v492
      %v513 = vpack.c.b16 %v497, %v495
      %v514 = vpack.c.b16 %v498, %v496
      %531 = vmatprep.subr.bf16.mxu0 %v500
      %532 = vmatpush1.bf16.msra.mxu0 %v499
      %533 = vmatprep.subr.bf16.mxu0 %v502
      %534 = vmatpush1.bf16.msra.mxu0 %v501
      %535 = vmatprep.subr.bf16.mxu0 %v504
      %536 = vmatpush1.bf16.msra.mxu0 %v503
      %537 = vmatprep.subr.bf16.mxu0 %v506
      %538 = vmatpush1.bf16.msra.mxu0 %v505
      %539 = vmatprep.subr.bf16.mxu0 %v508
      %540 = vmatpush1.bf16.msra.mxu0 %v507
      %541 = vmatprep.subr.bf16.mxu0 %v510
      %542 = vmatpush1.bf16.msra.mxu0 %v509
      %543 = vmatprep.subr.bf16.mxu0 %v512
      %544 = vmatpush1.bf16.msra.mxu0 %v511
      %545 = vmatprep.subr.bf16.mxu0 %v514
      %546 = vmatpush1.bf16.msra.mxu0 %v513
      %547 = vmatprep.subr.bf16.mxu0 0
      %548 = vmatpush1.bf16.msra.mxu0 0
      %549 = vmatprep.subr.bf16.mxu0 0
      %550 = vmatpush1.bf16.msra.mxu0 0
      %551 = vmatprep.subr.bf16.mxu0 0
      %552 = vmatpush1.bf16.msra.mxu0 0
      %553 = vmatprep.subr.bf16.mxu0 0
      %554 = vmatpush1.bf16.msra.mxu0 0
      %555 = vmatprep.subr.bf16.mxu0 0
      %556 = vmatpush1.bf16.msra.mxu0 0
      %557 = vmatprep.subr.bf16.mxu0 0
      %558 = vmatpush1.bf16.msra.mxu0 0
      %559 = vmatprep.subr.bf16.mxu0 0
      %560 = vmatpush1.bf16.msra.mxu0 0
      %561 = vmatprep.subr.bf16.mxu0 0
      %562 = vmatpush1.bf16.msra.mxu0 0
      %563 = vmatprep.mubr.bf16.mxu0 0
      %564 = vmatmul.mubr.bf16.gmra.mrb[0].mxu0 %v435
      %v565 = vpop.f32.mrb[0].mxu0
      %v566 = vadd.f32 %v326, %v565
      %v567 = vpop.f32.mrb[0].mxu0
      %v568 = vadd.f32 %v326, %v567
      %v569 = vpop.f32.mrb[0].mxu0
      %v570 = vadd.f32 %v331, %v569
      %v571 = vpop.f32.mrb[0].mxu0
      %v572 = vadd.f32 %v331, %v571
      %573 = vmatprep.mubr.bf16.mxu0 0
      %574 = vmatmul.mubr.bf16.gmra.mrb[0].mxu0 %v436
      %v575 = vpop.f32.mrb[0].mxu0
      %v576 = vadd.f32 %v336, %v575
      %v577 = vpop.f32.mrb[0].mxu0
      %v578 = vadd.f32 %v336, %v577
      %v579 = vpop.f32.mrb[0].mxu0
      %v580 = vadd.f32 %v341, %v579
      %v581 = vpop.f32.mrb[0].mxu0
      %v582 = vadd.f32 %v341, %v581
      %583 = vmatprep.mubr.bf16.mxu0 0
      %584 = vmatmul.mubr.bf16.gmra.mrb[0].mxu0 %v437
      %v585 = vpop.f32.mrb[0].mxu0
      %v586 = vadd.f32 %v346, %v585
      %v587 = vpop.f32.mrb[0].mxu0
      %v588 = vadd.f32 %v346, %v587
      %v589 = vpop.f32.mrb[0].mxu0
      %v590 = vadd.f32 %v351, %v589
      %v591 = vpop.f32.mrb[0].mxu0
      %v592 = vadd.f32 %v351, %v591
      %593 = vmatprep.mubr.bf16.mxu0 0
      %594 = vmatmul.mubr.bf16.gmra.mrb[0].mxu0 %v438
      %v595 = vpop.f32.mrb[0].mxu0
      %v596 = vadd.f32 %v356, %v595
      %v597 = vpop.f32.mrb[0].mxu0
      %v598 = vadd.f32 %v356, %v597
      %v599 = vpop.f32.mrb[0].mxu0
      %v600 = vadd.f32 %v361, %v599
      %v601 = vpop.f32.mrb[0].mxu0
      %v602 = vadd.f32 %v361, %v601
      %603 = vmatprep.mubr.bf16.mxu0 0
      %604 = vmatmul.mubr.bf16.gmra.mrb[0].mxu0 %v439
      %v605 = vpop.f32.mrb[0].mxu0
      %v606 = vadd.f32 %v366, %v605
      %v607 = vpop.f32.mrb[0].mxu0
      %v608 = vadd.f32 %v366, %v607
      %v609 = vpop.f32.mrb[0].mxu0
      %v610 = vadd.f32 %v371, %v609
      %v611 = vpop.f32.mrb[0].mxu0
      %v612 = vadd.f32 %v371, %v611
      %613 = vmatprep.mubr.bf16.mxu0 0
      %614 = vmatmul.mubr.bf16.gmra.mrb[0].mxu0 %v440
      %v615 = vpop.f32.mrb[0].mxu0
      %v616 = vadd.f32 %v376, %v615
      %v617 = vpop.f32.mrb[0].mxu0
      %v618 = vadd.f32 %v376, %v617
      %v619 = vpop.f32.mrb[0].mxu0
      %v620 = vadd.f32 %v381, %v619
      %v621 = vpop.f32.mrb[0].mxu0
      %v622 = vadd.f32 %v381, %v621
      %623 = vmatprep.mubr.bf16.mxu0 0
      %624 = vmatmul.mubr.bf16.gmra.mrb[0].mxu0 %v441
      %v625 = vpop.f32.mrb[0].mxu0
      %v626 = vadd.f32 %v386, %v625
      %v627 = vpop.f32.mrb[0].mxu0
      %v628 = vadd.f32 %v386, %v627
      %v629 = vpop.f32.mrb[0].mxu0
      %v630 = vadd.f32 %v391, %v629
      %v631 = vpop.f32.mrb[0].mxu0
      %v632 = vadd.f32 %v391, %v631
      %633 = vmatprep.mubr.bf16.mxu0 0
      %634 = vmatmul.mubr.bf16.gmra.mrb[0].mxu0 %v442
      %v635 = vpop.f32.mrb[0].mxu0
      %v636 = vadd.f32 %v396, %v635
      %v637 = vpop.f32.mrb[0].mxu0
      %v638 = vadd.f32 %v396, %v637
      %v639 = vpop.f32.mrb[0].mxu0
      %v640 = vadd.f32 %v401, %v639
      %v641 = vpop.f32.mrb[0].mxu0
      %v642 = vadd.f32 %v401, %v641
      %643 = vdwg.mxu0
      %644 = vst [vmem:[%s271] sm:$0xff] %v566
      %645 = vst [vmem:[%s271 + $0x8] sm:$0xff] %v568
      %646 = vst [vmem:[%s271 + $0x10] sm:$0xff] %v570
      %647 = vst [vmem:[%s271 + $0x18] sm:$0xff] %v572
      %648 = vst [vmem:[%s271 + $0x20] sm:$0xff] %v576
      %649 = vst [vmem:[%s271 + $0x28] sm:$0xff] %v578
      %650 = vst [vmem:[%s271 + $0x30] sm:$0xff] %v580
      %651 = vst [vmem:[%s271 + $0x38] sm:$0xff] %v582
      %652 = vst [vmem:[%s271 + $0x40] sm:$0xff] %v586
      %653 = vst [vmem:[%s271 + $0x48] sm:$0xff] %v588
      %654 = vst [vmem:[%s271 + $0x50] sm:$0xff] %v590
      %655 = vst [vmem:[%s271 + $0x58] sm:$0xff] %v592
      %656 = vst [vmem:[%s271 + $0x60] sm:$0xff] %v596
      %657 = vst [vmem:[%s271 + $0x68] sm:$0xff] %v598
      %658 = vst [vmem:[%s271 + $0x70] sm:$0xff] %v600
      %659 = vst [vmem:[%s271 + $0x78] sm:$0xff] %v602
      %660 = vst [vmem:[%s271 + $0x80] sm:$0xff] %v606
      %661 = vst [vmem:[%s271 + $0x88] sm:$0xff] %v608
      %662 = vst [vmem:[%s271 + $0x90] sm:$0xff] %v610
      %663 = vst [vmem:[%s271 + $0x98] sm:$0xff] %v612
      %664 = vst [vmem:[%s271 + $0xa0] sm:$0xff] %v616
      %665 = vst [vmem:[%s271 + $0xa8] sm:$0xff] %v618
      %666 = vst [vmem:[%s271 + $0xb0] sm:$0xff] %v620
      %667 = vst [vmem:[%s271 + $0xb8] sm:$0xff] %v622
      %668 = vst [vmem:[%s271 + $0xc0] sm:$0xff] %v626
      %669 = vst [vmem:[%s271 + $0xc8] sm:$0xff] %v628
      %670 = vst [vmem:[%s271 + $0xd0] sm:$0xff] %v630
      %671 = vst [vmem:[%s271 + $0xd8] sm:$0xff] %v632
      %672 = vst [vmem:[%s271 + $0xe0] sm:$0xff] %v636
      %673 = vst [vmem:[%s271 + $0xe8] sm:$0xff] %v638
      %674 = vst [vmem:[%s271 + $0xf0] sm:$0xff] %v640
      %675 = vst [vmem:[%s271 + $0xf8] sm:$0xff] %v642
      %s676 = smul.u32 16, %s20
      %s677 = smul.u32 2, %s21
      %p678 = scmp.lt.s32.totalorder %s19, 1
      %s679 = scalar_select %p678, %s19, 1
      %p680 = scmp.lt.s32.totalorder %s676, 15
      %s681 = scalar_select %p680, %s676, 15
      %p682 = scmp.lt.s32.totalorder %s677, 1
      %s683 = scalar_select %p682, %s677, 1
      %s684 = smul.addr %s681, 2
      %s685 = sadd.s32 %s683, %s684
      %s686 = smul.addr %s679, 32
      %s687 = sadd.s32 %s685, %s686
      %s688 = smul.addr %s687, 8
      %s689 = scalar_lea.vmem %s3, %s688
      // Predicated region
      $region33: #{thomson_conv_forward.2} parent=31 // pred_check
        %p690 = pneg %p135
      $region34: #{thomson_conv_forward.2} parent=31 // pred_check_branch
        %692 = sbr.rel (%p690) target = $region36
      $region35: #{thomson_conv_forward.2} parent=31 // pred_region
        %s693 = smul.u32 16, %s20
        %s694 = smul.u32 2, %s21
      $region36: #{thomson_conv_forward.2} parent=31 // pred_fallthru
        _
    $region32: #{thomson_conv_forward.2} parent=5 // pred_fallthru
      _
    %p695 = scmp.le.s32.totalorder 2, %s9
    // Predicated region
    $region37: #{thomson_conv_forward.2} parent=5 // pred_check
      %p696 = pneg %p695
    $region38: #{thomson_conv_forward.2} parent=5 // pred_check_branch
      %698 = sbr.rel (%p696) target = $region40
    $region39: #{thomson_conv_forward.2} parent=5 // pred_region
      %s699 = ssub.s32 %s9, 2
      // Predicated region
      $region41: #{thomson_conv_forward.2} parent=39 // pred_check
        %p700 = pneg %p141
      $region42: #{thomson_conv_forward.2} parent=39 // pred_check_branch
        %702 = sbr.rel (%p700) target = $region44
      $region43: #{thomson_conv_forward.2} parent=39 // pred_region
        %s703 = smul.u32 16, %s23
        %s704 = smul.u32 2, %s24
        %p705 = scmp.lt.s32.totalorder %s22, 1
        %s706 = scalar_select %p705, %s22, 1
        %p707 = scmp.lt.s32.totalorder %s703, 15
        %s708 = scalar_select %p707, %s703, 15
        %p709 = scmp.lt.s32.totalorder %s704, 1
        %s710 = scalar_select %p709, %s704, 1
        %s711 = smul.addr %s708, 2
        %s712 = sadd.s32 %s710, %s711
        %s713 = smul.addr %s706, 32
        %s714 = sadd.s32 %s712, %s713
        %s715 = smul.addr %s714, 8
        %s716 = scalar_lea.vmem %s3, %s715
      $region44: #{thomson_conv_forward.2} parent=39 // pred_fallthru
        _
    $region40: #{thomson_conv_forward.2} parent=5 // pred_fallthru
      _
  $region6: #{thomson_conv_forward.2} parent=0 // loop_footer
    %s13 = sadd.s32 1, %s9
  $region7: #{thomson_conv_forward.2} parent=0 // loop_footer_branch
    %8 = sbr.rel target = $region3
  $region8: #{thomson_conv_forward.2} parent=0 // loop_exit
    _

// kernel: thomson_conv_forward.3
$region0: #{thomson_conv_forward.3}
  #allocation0 [shape = 'u32[]', space=smem, size = 0x4, offset = 0x4, fixed_abs, tag = 'smem constant byte address 0x4 - core index']
  #allocation1 [shape = 'u32[144,128]{1,0:T(1,128)}', space=vmem, size = 0x12000, scoped, tag = 'internal scratch']
  #allocation2 [shape = 'f32[128,128]{1,0:T(8,128)}', space=vmem, size = 0x10000, scoped, tag = 'scratch operand']
  %s0 = inlined_call_operand.vmem [shape: f32[40,128], index: 0, kind: input, shape index: {}]
  %s1 = inlined_call_operand.hbm [shape: f32[1,1], index: 1, kind: output, shape index: {}]
  %s2 = sld [smem:[#allocation0]]
  $region22: #{thomson_conv_forward.3} parent=0
    _
  %s4 = ssub.s32 1, %s2
  %s5 = scalar_select 0, %s4, %s2
  $region1: #{thomson_conv_forward.3} parent=0
    #allocation3 [shape = 'u8[512]{0}', space=vmem, size = 0x400, scoped, tag = 'output window, operand 0, single buffered']
    #allocation4 [shape = 's32[1]{0}', space=sflag, size = 0x4, scoped, tag = 'scoped memory for thomson_conv_forward.3']
    %6 = vsyncpa [#allocation4], 0
    // Predicated region
    $region2: #{thomson_conv_forward.3} parent=1 // pred_check
      _
    $region3: #{thomson_conv_forward.3} parent=1 // pred_check_branch
      %8 = sbr.rel (0) target = $region5
    $region4: #{thomson_conv_forward.3} parent=1 // pred_region
      _
    $region5: #{thomson_conv_forward.3} parent=1 // pred_fallthru
      _
    %p9 = scmp.eq.s32.totalorder 0, 0
    // Predicated region
    $region6: #{thomson_conv_forward.3} parent=1 // pred_check
      %p10 = pneg %p9
    $region7: #{thomson_conv_forward.3} parent=1 // pred_check_branch
      %12 = sbr.rel (%p10) target = $region9
    $region8: #{thomson_conv_forward.3} parent=1 // pred_region
      %13 = vst [vmem:[#allocation2] sm:$0xff] 0.0
      %14 = vst [vmem:[#allocation2 + $0x8] sm:$0xff] 0.0
      %15 = vst [vmem:[#allocation2 + $0x10] sm:$0xff] 0.0
      %16 = vst [vmem:[#allocation2 + $0x18] sm:$0xff] 0.0
      %17 = vst [vmem:[#allocation2 + $0x20] sm:$0xff] 0.0
      %18 = vst [vmem:[#allocation2 + $0x28] sm:$0xff] 0.0
      %19 = vst [vmem:[#allocation2 + $0x30] sm:$0xff] 0.0
      %20 = vst [vmem:[#allocation2 + $0x38] sm:$0xff] 0.0
      %21 = vst [vmem:[#allocation2 + $0x40] sm:$0xff] 0.0
      %22 = vst [vmem:[#allocation2 + $0x48] sm:$0xff] 0.0
      %23 = vst [vmem:[#allocation2 + $0x50] sm:$0xff] 0.0
      %24 = vst [vmem:[#allocation2 + $0x58] sm:$0xff] 0.0
      %25 = vst [vmem:[#allocation2 + $0x60] sm:$0xff] 0.0
      %26 = vst [vmem:[#allocation2 + $0x68] sm:$0xff] 0.0
      %27 = vst [vmem:[#allocation2 + $0x70] sm:$0xff] 0.0
      %28 = vst [vmem:[#allocation2 + $0x78] sm:$0xff] 0.0
    $region9: #{thomson_conv_forward.3} parent=1 // pred_fallthru
      _
    %v29 = vld [vmem:[%s0] sm:$0xff]
    %v30 = vld [vmem:[%s0 + $0x8] sm:$0xff]
    %v31 = vld [vmem:[%s0 + $0x10] sm:$0xff]
    %v32 = vld [vmem:[%s0 + $0x18] sm:$0xff]
    %v33 = vld [vmem:[%s0 + $0x20] sm:$0xff]
    %v34 = vld [vmem:[#allocation2] sm:$0xff]
    %v35 = vld [vmem:[#allocation2 + $0x8] sm:$0xff]
    %v36 = vld [vmem:[#allocation2 + $0x10] sm:$0xff]
    %v37 = vld [vmem:[#allocation2 + $0x18] sm:$0xff]
    %v38 = vld [vmem:[#allocation2 + $0x20] sm:$0xff]
    %v39 = vld [vmem:[#allocation2 + $0x28] sm:$0xff]
    %v40 = vld [vmem:[#allocation2 + $0x30] sm:$0xff]
    %v41 = vld [vmem:[#allocation2 + $0x38] sm:$0xff]
    %v42 = vld [vmem:[#allocation2 + $0x40] sm:$0xff]
    %v43 = vld [vmem:[#allocation2 + $0x48] sm:$0xff]
    %v44 = vld [vmem:[#allocation2 + $0x50] sm:$0xff]
    %v45 = vld [vmem:[#allocation2 + $0x58] sm:$0xff]
    %v46 = vld [vmem:[#allocation2 + $0x60] sm:$0xff]
    %v47 = vld [vmem:[#allocation2 + $0x68] sm:$0xff]
    %v48 = vld [vmem:[#allocation2 + $0x70] sm:$0xff]
    %v49 = vld [vmem:[#allocation2 + $0x78] sm:$0xff]
    %50 = vxpose.xlu0.b32.start [1/16] %v29, 128
    %51 = vxpose.xlu0.b32.cont [2/16] %v30, 128
    %52 = vxpose.xlu0.b32.cont [3/16] %v31, 128
    %53 = vxpose.xlu0.b32.cont [4/16] %v32, 128
    %54 = vxpose.xlu0.b32.cont [5/16] %v33, 128
    %55 = vxpose.xlu0.b32.cont [6/16] 0.0, 128
    %56 = vxpose.xlu0.b32.cont [7/16] 0.0, 128
    %57 = vxpose.xlu0.b32.cont [8/16] 0.0, 128
    %58 = vxpose.xlu0.b32.cont [9/16] 0.0, 128
    %59 = vxpose.xlu0.b32.cont [10/16] 0.0, 128
    %60 = vxpose.xlu0.b32.cont [11/16] 0.0, 128
    %61 = vxpose.xlu0.b32.cont [12/16] 0.0, 128
    %62 = vxpose.xlu0.b32.cont [13/16] 0.0, 128
    %63 = vxpose.xlu0.b32.cont [14/16] 0.0, 128
    %64 = vxpose.xlu0.b32.cont [15/16] 0.0, 128
    %65 = vxpose.xlu0.b32.end [16/16] 0.0, 128
    %v66 = vpop.trf.xlu0
    %v67 = vpop.trf.xlu0
    %v68 = vpop.trf.xlu0
    %v69 = vpop.trf.xlu0
    %v70 = vpop.trf.xlu0
    %v71 = vpop.trf.xlu0
    %v72 = vpop.trf.xlu0
    %v73 = vpop.trf.xlu0
    %v74 = vpop.trf.xlu0
    %v75 = vpop.trf.xlu0
    %v76 = vpop.trf.xlu0
    %v77 = vpop.trf.xlu0
    %v78 = vpop.trf.xlu0
    %v79 = vpop.trf.xlu0
    %v80 = vpop.trf.xlu0
    %v81 = vpop.trf.xlu0
    %vm82 = vcmask 326656
    %v84 = vsel %vm82, %v66, 0
    %v87 = vsel %vm82, %v67, 0
    %v90 = vsel %vm82, %v68, 0
    %v93 = vsel %vm82, %v69, 0
    %v96 = vsel %vm82, %v70, 0
    %v99 = vsel %vm82, %v71, 0
    %v102 = vsel %vm82, %v72, 0
    %v105 = vsel %vm82, %v73, 0
    %v108 = vsel %vm82, %v74, 0
    %v111 = vsel %vm82, %v75, 0
    %v114 = vsel %vm82, %v76, 0
    %v117 = vsel %vm82, %v77, 0
    %v120 = vsel %vm82, %v78, 0
    %v123 = vsel %vm82, %v79, 0
    %v126 = vsel %vm82, %v80, 0
    %v129 = vsel %vm82, %v81, 0
    %131 = vmatprep.subr.mxu0 0.0
    %132 = vmatpush1.msra.mxu0 %v29
    %133 = vmatprep.subr.mxu0 0.0
    %134 = vmatpush1.msra.mxu0 %v30
    %135 = vmatprep.subr.mxu0 0.0
    %136 = vmatpush1.msra.mxu0 %v31
    %137 = vmatprep.subr.mxu0 0.0
    %138 = vmatpush1.msra.mxu0 %v32
    %139 = vmatprep.subr.mxu0 0.0
    %140 = vmatpush1.msra.mxu0 %v33
    %141 = vmatprep.subr.mxu0 0.0
    %142 = vmatpush1.msra.mxu0 0.0
    %143 = vmatprep.subr.mxu0 0.0
    %144 = vmatpush1.msra.mxu0 0.0
    %145 = vmatprep.subr.mxu0 0.0
    %146 = vmatpush1.msra.mxu0 0.0
    %147 = vmatprep.subr.mxu0 0.0
    %148 = vmatpush1.msra.mxu0 0.0
    %149 = vmatprep.subr.mxu0 0.0
    %150 = vmatpush1.msra.mxu0 0.0
    %151 = vmatprep.subr.mxu0 0.0
    %152 = vmatpush1.msra.mxu0 0.0
    %153 = vmatprep.subr.mxu0 0.0
    %154 = vmatpush1.msra.mxu0 0.0
    %155 = vmatprep.subr.mxu0 0.0
    %156 = vmatpush1.msra.mxu0 0.0
    %157 = vmatprep.subr.mxu0 0.0
    %158 = vmatpush1.msra.mxu0 0.0
    %159 = vmatprep.subr.mxu0 0.0
    %160 = vmatpush1.msra.mxu0 0.0
    %161 = vmatprep.subr.mxu0 0.0
    %162 = vmatpush1.msra.mxu0 0.0
    %163 = vmatprep.subr.mxu0 0.0
    %164 = vmatpush1.msra.mxu0 0.0
    %165 = vmatprep.subr.mxu0 0.0
    %166 = vmatpush1.msra.mxu0 0.0
    %167 = vmatprep.subr.mxu0 0.0
    %168 = vmatpush1.msra.mxu0 0.0
    %169 = vmatprep.subr.mxu0 0.0
    %170 = vmatpush1.msra.mxu0 0.0
    %171 = vmatprep.subr.mxu0 0.0
    %172 = vmatpush1.msra.mxu0 0.0
    %173 = vmatprep.subr.mxu0 0.0
    %174 = vmatpush1.msra.mxu0 0.0
    %175 = vmatprep.subr.mxu0 0.0
    %176 = vmatpush1.msra.mxu0 0.0
    %177 = vmatprep.subr.mxu0 0.0
    %178 = vmatpush1.msra.mxu0 0.0
    %179 = vmatprep.subr.mxu0 0.0
    %180 = vmatpush1.msra.mxu0 0.0
    %181 = vmatprep.subr.mxu0 0.0
    %182 = vmatpush1.msra.mxu0 0.0
    %183 = vmatprep.subr.mxu0 0.0
    %184 = vmatpush1.msra.mxu0 0.0
    %185 = vmatprep.subr.mxu0 0.0
    %186 = vmatpush1.msra.mxu0 0.0
    %187 = vmatprep.subr.mxu0 0.0
    %188 = vmatpush1.msra.mxu0 0.0
    %189 = vmatprep.subr.mxu0 0.0
    %190 = vmatpush1.msra.mxu0 0.0
    %191 = vmatprep.subr.mxu0 0.0
    %192 = vmatpush1.msra.mxu0 0.0
    %193 = vmatprep.subr.mxu0 0.0
    %194 = vmatpush1.msra.mxu0 0.0
    %195 = vmatprep.mubr.f32.mxu0 0.0
    %196 = vmatmul.mubr.f32.gmra.mrb[0].mxu0 %v84
    %v197 = vpop.f32.mrb[0].mxu0
    %v198 = vadd.f32 0.0, %v197
    %v199 = vpop.f32.mrb[0].mxu0
    %200 = vmatprep.mubr.f32.mxu0 0.0
    %201 = vmatmul.mubr.f32.gmra.mrb[0].mxu0 %v87
    %v202 = vpop.f32.mrb[0].mxu0
    %v203 = vadd.f32 0.0, %v202
    %v204 = vpop.f32.mrb[0].mxu0
    %205 = vmatprep.mubr.f32.mxu0 0.0
    %206 = vmatmul.mubr.f32.gmra.mrb[0].mxu0 %v90
    %v207 = vpop.f32.mrb[0].mxu0
    %v208 = vadd.f32 0.0, %v207
    %v209 = vpop.f32.mrb[0].mxu0
    %210 = vmatprep.mubr.f32.mxu0 0.0
    %211 = vmatmul.mubr.f32.gmra.mrb[0].mxu0 %v93
    %v212 = vpop.f32.mrb[0].mxu0
    %v213 = vadd.f32 0.0, %v212
    %v214 = vpop.f32.mrb[0].mxu0
    %215 = vmatprep.mubr.f32.mxu0 0.0
    %216 = vmatmul.mubr.f32.gmra.mrb[0].mxu0 %v96
    %v217 = vpop.f32.mrb[0].mxu0
    %v218 = vadd.f32 0.0, %v217
    %v219 = vpop.f32.mrb[0].mxu0
    %220 = vmatprep.mubr.f32.mxu0 0.0
    %221 = vmatmul.mubr.f32.gmra.mrb[0].mxu0 %v99
    %v222 = vpop.f32.mrb[0].mxu0
    %v223 = vadd.f32 0.0, %v222
    %v224 = vpop.f32.mrb[0].mxu0
    %225 = vmatprep.mubr.f32.mxu0 0.0
    %226 = vmatmul.mubr.f32.gmra.mrb[0].mxu0 %v102
    %v227 = vpop.f32.mrb[0].mxu0
    %v228 = vadd.f32 0.0, %v227
    %v229 = vpop.f32.mrb[0].mxu0
    %230 = vmatprep.mubr.f32.mxu0 0.0
    %231 = vmatmul.mubr.f32.gmra.mrb[0].mxu0 %v105
    %v232 = vpop.f32.mrb[0].mxu0
    %v233 = vadd.f32 0.0, %v232
    %v234 = vpop.f32.mrb[0].mxu0
    %235 = vmatprep.mubr.f32.mxu0 0.0
    %236 = vmatmul.mubr.f32.gmra.mrb[0].mxu0 %v108
    %v237 = vpop.f32.mrb[0].mxu0
    %v238 = vadd.f32 0.0, %v237
    %v239 = vpop.f32.mrb[0].mxu0
    %240 = vmatprep.mubr.f32.mxu0 0.0
    %241 = vmatmul.mubr.f32.gmra.mrb[0].mxu0 %v111
    %v242 = vpop.f32.mrb[0].mxu0
    %v243 = vadd.f32 0.0, %v242
    %v244 = vpop.f32.mrb[0].mxu0
    %245 = vmatprep.mubr.f32.mxu0 0.0
    %246 = vmatmul.mubr.f32.gmra.mrb[0].mxu0 %v114
    %v247 = vpop.f32.mrb[0].mxu0
    %v248 = vadd.f32 0.0, %v247
    %v249 = vpop.f32.mrb[0].mxu0
    %250 = vmatprep.mubr.f32.mxu0 0.0
    %251 = vmatmul.mubr.f32.gmra.mrb[0].mxu0 %v117
    %v252 = vpop.f32.mrb[0].mxu0
    %v253 = vadd.f32 0.0, %v252
    %v254 = vpop.f32.mrb[0].mxu0
    %255 = vmatprep.mubr.f32.mxu0 0.0
    %256 = vmatmul.mubr.f32.gmra.mrb[0].mxu0 %v120
    %v257 = vpop.f32.mrb[0].mxu0
    %v258 = vadd.f32 0.0, %v257
    %v259 = vpop.f32.mrb[0].mxu0
    %260 = vmatprep.mubr.f32.mxu0 0.0
    %261 = vmatmul.mubr.f32.gmra.mrb[0].mxu0 %v123
    %v262 = vpop.f32.mrb[0].mxu0
    %v263 = vadd.f32 0.0, %v262
    %v264 = vpop.f32.mrb[0].mxu0
    %265 = vmatprep.mubr.f32.mxu0 0.0
    %266 = vmatmul.mubr.f32.gmra.mrb[0].mxu0 %v126
    %v267 = vpop.f32.mrb[0].mxu0
    %v268 = vadd.f32 0.0, %v267
    %v269 = vpop.f32.mrb[0].mxu0
    %270 = vmatprep.mubr.f32.mxu0 0.0
    %271 = vmatmul.mubr.f32.gmra.mrb[0].mxu0 %v129
    %v272 = vpop.f32.mrb[0].mxu0
    %v273 = vadd.f32 0.0, %v272
    %v274 = vpop.f32.mrb[0].mxu0
    %275 = vdwg.mxu0
    %v276 = vadd.f32 %v34, %v198
    %v277 = vadd.f32 %v35, %v203
    %v278 = vadd.f32 %v36, %v208
    %v279 = vadd.f32 %v37, %v213
    %v280 = vadd.f32 %v38, %v218
    %v281 = vadd.f32 %v39, %v223
    %v282 = vadd.f32 %v40, %v228
    %v283 = vadd.f32 %v41, %v233
    %v284 = vadd.f32 %v42, %v238
    %v285 = vadd.f32 %v43, %v243
    %v286 = vadd.f32 %v44, %v248
    %v287 = vadd.f32 %v45, %v253
    %v288 = vadd.f32 %v46, %v258
    %v289 = vadd.f32 %v47, %v263
    %v290 = vadd.f32 %v48, %v268
    %v291 = vadd.f32 %v49, %v273
    %292 = vst [vmem:[#allocation2] sm:$0xff] %v276
    %293 = vst [vmem:[#allocation2 + $0x8] sm:$0xff] %v277
    %294 = vst [vmem:[#allocation2 + $0x10] sm:$0xff] %v278
    %295 = vst [vmem:[#allocation2 + $0x18] sm:$0xff] %v279
    %296 = vst [vmem:[#allocation2 + $0x20] sm:$0xff] %v280
    %297 = vst [vmem:[#allocation2 + $0x28] sm:$0xff] %v281
    %298 = vst [vmem:[#allocation2 + $0x30] sm:$0xff] %v282
    %299 = vst [vmem:[#allocation2 + $0x38] sm:$0xff] %v283
    %300 = vst [vmem:[#allocation2 + $0x40] sm:$0xff] %v284
    %301 = vst [vmem:[#allocation2 + $0x48] sm:$0xff] %v285
    %302 = vst [vmem:[#allocation2 + $0x50] sm:$0xff] %v286
    %303 = vst [vmem:[#allocation2 + $0x58] sm:$0xff] %v287
    %304 = vst [vmem:[#allocation2 + $0x60] sm:$0xff] %v288
    %305 = vst [vmem:[#allocation2 + $0x68] sm:$0xff] %v289
    %306 = vst [vmem:[#allocation2 + $0x70] sm:$0xff] %v290
    %307 = vst [vmem:[#allocation2 + $0x78] sm:$0xff] %v291
    // Predicated region
    $region10: #{thomson_conv_forward.3} parent=1 // pred_check
      %p308 = pneg %p9
    $region11: #{thomson_conv_forward.3} parent=1 // pred_check_branch
      %310 = sbr.rel (%p308) target = $region13
    $region12: #{thomson_conv_forward.3} parent=1 // pred_region
      %v311 = vld [vmem:[#allocation2] sm:$0xff]
      %v312 = vld [vmem:[#allocation2 + $0x8] sm:$0xff]
      %v313 = vld [vmem:[#allocation2 + $0x10] sm:$0xff]
      %v314 = vld [vmem:[#allocation2 + $0x18] sm:$0xff]
      %v315 = vld [vmem:[#allocation2 + $0x20] sm:$0xff]
      %v316 = vld [vmem:[#allocation2 + $0x28] sm:$0xff]
      %v317 = vld [vmem:[#allocation2 + $0x30] sm:$0xff]
      %v318 = vld [vmem:[#allocation2 + $0x38] sm:$0xff]
      %v319 = vld [vmem:[#allocation2 + $0x40] sm:$0xff]
      %v320 = vld [vmem:[#allocation2 + $0x48] sm:$0xff]
      %v321 = vld [vmem:[#allocation2 + $0x50] sm:$0xff]
      %v322 = vld [vmem:[#allocation2 + $0x58] sm:$0xff]
      %v323 = vld [vmem:[#allocation2 + $0x60] sm:$0xff]
      %v324 = vld [vmem:[#allocation2 + $0x68] sm:$0xff]
      %v325 = vld [vmem:[#allocation2 + $0x70] sm:$0xff]
      %v326 = vld [vmem:[#allocation2 + $0x78] sm:$0xff]
      %v327 = vlaneseq
      %v328 = vshrl.u32 %v327, 7
      %v329 = vadd.s32 %v328, 8
      %v330 = vadd.s32 %v328, 16
      %v331 = vadd.s32 %v328, 24
      %v332 = vadd.s32 %v328, 32
      %v333 = vadd.s32 %v328, 40
      %v334 = vadd.s32 %v328, 48
      %v335 = vadd.s32 %v328, 56
      %v336 = vadd.s32 %v328, 64
      %v337 = vadd.s32 %v328, 72
      %v338 = vadd.s32 %v328, 80
      %v339 = vadd.s32 %v328, 88
      %v340 = vadd.s32 %v328, 96
      %v341 = vadd.s32 %v328, 104
      %v342 = vadd.s32 %v328, 112
      %v343 = vadd.s32 %v328, 120
      %v344 = vlaneseq
      %v345 = vand.u32 %v344, 127
      %vm346 = vcmp.eq.s32.totalorder %v328, %v345
      %vm347 = vcmp.eq.s32.totalorder %v329, %v345
      %vm348 = vcmp.eq.s32.totalorder %v330, %v345
      %vm349 = vcmp.eq.s32.totalorder %v331, %v345
      %vm350 = vcmp.eq.s32.totalorder %v332, %v345
      %vm351 = vcmp.eq.s32.totalorder %v333, %v345
      %vm352 = vcmp.eq.s32.totalorder %v334, %v345
      %vm353 = vcmp.eq.s32.totalorder %v335, %v345
      %vm354 = vcmp.eq.s32.totalorder %v336, %v345
      %vm355 = vcmp.eq.s32.totalorder %v337, %v345
      %vm356 = vcmp.eq.s32.totalorder %v338, %v345
      %vm357 = vcmp.eq.s32.totalorder %v339, %v345
      %vm358 = vcmp.eq.s32.totalorder %v340, %v345
      %vm359 = vcmp.eq.s32.totalorder %v341, %v345
      %vm360 = vcmp.eq.s32.totalorder %v342, %v345
      %vm361 = vcmp.eq.s32.totalorder %v343, %v345
      %v362 = vsel %vm346, %v311, 0.0
      %v363 = vsel %vm347, %v312, 0.0
      %v364 = vsel %vm348, %v313, 0.0
      %v365 = vsel %vm349, %v314, 0.0
      %v366 = vsel %vm350, %v315, 0.0
      %v367 = vsel %vm351, %v316, 0.0
      %v368 = vsel %vm352, %v317, 0.0
      %v369 = vsel %vm353, %v318, 0.0
      %v370 = vsel %vm354, %v319, 0.0
      %v371 = vsel %vm355, %v320, 0.0
      %v372 = vsel %vm356, %v321, 0.0
      %v373 = vsel %vm357, %v322, 0.0
      %v374 = vsel %vm358, %v323, 0.0
      %v375 = vsel %vm359, %v324, 0.0
      %v376 = vsel %vm360, %v325, 0.0
      %v377 = vsel %vm361, %v326, 0.0
      %v378 = vadd.f32 %v362, %v363
      %v379 = vadd.f32 %v378, %v364
      %v380 = vadd.f32 %v379, %v365
      %v381 = vadd.f32 %v380, %v366
      %v382 = vadd.f32 %v381, %v367
      %v383 = vadd.f32 %v382, %v368
      %v384 = vadd.f32 %v383, %v369
      %v385 = vadd.f32 %v384, %v370
      %v386 = vadd.f32 %v385, %v371
      %v387 = vadd.f32 %v386, %v372
      %v388 = vadd.f32 %v387, %v373
      %v389 = vadd.f32 %v388, %v374
      %v390 = vadd.f32 %v389, %v375
      %v391 = vadd.f32 %v390, %v376
      %v392 = vadd.f32 %v391, %v377
      %v393 = vrot.slane %v392, 4
      %v394 = vadd.f32 %v392, %v393
      %v395 = vrot.slane %v394, 2
      %v396 = vadd.f32 %v394, %v395
      %v397 = vrot.slane %v396, 1
      %v398 = vadd.f32 %v396, %v397
      %v399 = vrsqrt.pop %v398
      %v400 = vmul.f32 %v398, %v399
      %vm401 = vcmp.eq.f32.partialorder %v398, inf
      %v402 = vsel %vm401, %v398, %v400
      %vm403 = vcmp.eq.f32.partialorder %v398, 0.0
      %v404 = vand.u32 %v398, 2147483648
      %v405 = vsel %vm403, %v404, %v402
      %v406 = vadd.f32 %v405, 0.0001
      %407 = vxpose.xlu0.b32.start [1/16] %v406, 128
      %408 = vxpose.xlu0.b32.cont [2/16] 0.0, 128
      %409 = vxpose.xlu0.b32.cont [3/16] 0.0, 128
      %410 = vxpose.xlu0.b32.cont [4/16] 0.0, 128
      %411 = vxpose.xlu0.b32.cont [5/16] 0.0, 128
      %412 = vxpose.xlu0.b32.cont [6/16] 0.0, 128
      %413 = vxpose.xlu0.b32.cont [7/16] 0.0, 128
      %414 = vxpose.xlu0.b32.cont [8/16] 0.0, 128
      %415 = vxpose.xlu0.b32.cont [9/16] 0.0, 128
      %416 = vxpose.xlu0.b32.cont [10/16] 0.0, 128
      %417 = vxpose.xlu0.b32.cont [11/16] 0.0, 128
      %418 = vxpose.xlu0.b32.cont [12/16] 0.0, 128
      %419 = vxpose.xlu0.b32.cont [13/16] 0.0, 128
      %420 = vxpose.xlu0.b32.cont [14/16] 0.0, 128
      %421 = vxpose.xlu0.b32.cont [15/16] 0.0, 128
      %422 = vxpose.xlu0.b32.end [16/16] 0.0, 128
      %v423 = vpop.trf.xlu0
      %v424 = vpop.trf.xlu0
      %v425 = vpop.trf.xlu0
      %v426 = vpop.trf.xlu0
      %v427 = vpop.trf.xlu0
      %v428 = vpop.trf.xlu0
      %v429 = vpop.trf.xlu0
      %v430 = vpop.trf.xlu0
      %v431 = vpop.trf.xlu0
      %v432 = vpop.trf.xlu0
      %v433 = vpop.trf.xlu0
      %v434 = vpop.trf.xlu0
      %v435 = vpop.trf.xlu0
      %v436 = vpop.trf.xlu0
      %v437 = vpop.trf.xlu0
      %v438 = vpop.trf.xlu0
      %vm439 = vcmask 7168
      %v441 = vsel %vm439, %v423, 0
      %v444 = vsel %vm439, %v424, 0
      %v447 = vsel %vm439, %v425, 0
      %v450 = vsel %vm439, %v426, 0
      %v453 = vsel %vm439, %v427, 0
      %v456 = vsel %vm439, %v428, 0
      %v459 = vsel %vm439, %v429, 0
      %v462 = vsel %vm439, %v430, 0
      %v465 = vsel %vm439, %v431, 0
      %v468 = vsel %vm439, %v432, 0
      %v471 = vsel %vm439, %v433, 0
      %v474 = vsel %vm439, %v434, 0
      %v477 = vsel %vm439, %v435, 0
      %v480 = vsel %vm439, %v436, 0
      %v483 = vsel %vm439, %v437, 0
      %v486 = vsel %vm439, %v438, 0
      %vm488 = vcmask 1040384
      %v490 = vsel %vm488, %v406, 0
      %492 = vmatprep.subr.mxu0 0.0
      %493 = vmatpush1.msra.mxu0 %v490
      %494 = vmatprep.subr.mxu0 0.0
      %495 = vmatpush1.msra.mxu0 0.0
      %496 = vmatprep.subr.mxu0 0.0
      %497 = vmatpush1.msra.mxu0 0.0
      %498 = vmatprep.subr.mxu0 0.0
      %499 = vmatpush1.msra.mxu0 0.0
      %500 = vmatprep.subr.mxu0 0.0
      %501 = vmatpush1.msra.mxu0 0.0
      %502 = vmatprep.subr.mxu0 0.0
      %503 = vmatpush1.msra.mxu0 0.0
      %504 = vmatprep.subr.mxu0 0.0
      %505 = vmatpush1.msra.mxu0 0.0
      %506 = vmatprep.subr.mxu0 0.0
      %507 = vmatpush1.msra.mxu0 0.0
      %508 = vmatprep.subr.mxu0 0.0
      %509 = vmatpush1.msra.mxu0 0.0
      %510 = vmatprep.subr.mxu0 0.0
      %511 = vmatpush1.msra.mxu0 0.0
      %512 = vmatprep.subr.mxu0 0.0
      %513 = vmatpush1.msra.mxu0 0.0
      %514 = vmatprep.subr.mxu0 0.0
      %515 = vmatpush1.msra.mxu0 0.0
      %516 = vmatprep.subr.mxu0 0.0
      %517 = vmatpush1.msra.mxu0 0.0
      %518 = vmatprep.subr.mxu0 0.0
      %519 = vmatpush1.msra.mxu0 0.0
      %520 = vmatprep.subr.mxu0 0.0
      %521 = vmatpush1.msra.mxu0 0.0
      %522 = vmatprep.subr.mxu0 0.0
      %523 = vmatpush1.msra.mxu0 0.0
      %524 = vmatprep.subr.mxu0 0.0
      %525 = vmatpush1.msra.mxu0 0.0
      %526 = vmatprep.subr.mxu0 0.0
      %527 = vmatpush1.msra.mxu0 0.0
      %528 = vmatprep.subr.mxu0 0.0
      %529 = vmatpush1.msra.mxu0 0.0
      %530 = vmatprep.subr.mxu0 0.0
      %531 = vmatpush1.msra.mxu0 0.0
      %532 = vmatprep.subr.mxu0 0.0
      %533 = vmatpush1.msra.mxu0 0.0
      %534 = vmatprep.subr.mxu0 0.0
      %535 = vmatpush1.msra.mxu0 0.0
      %536 = vmatprep.subr.mxu0 0.0
      %537 = vmatpush1.msra.mxu0 0.0
      %538 = vmatprep.subr.mxu0 0.0
      %539 = vmatpush1.msra.mxu0 0.0
      %540 = vmatprep.subr.mxu0 0.0
      %541 = vmatpush1.msra.mxu0 0.0
      %542 = vmatprep.subr.mxu0 0.0
      %543 = vmatpush1.msra.mxu0 0.0
      %544 = vmatprep.subr.mxu0 0.0
      %545 = vmatpush1.msra.mxu0 0.0
      %546 = vmatprep.subr.mxu0 0.0
      %547 = vmatpush1.msra.mxu0 0.0
      %548 = vmatprep.subr.mxu0 0.0
      %549 = vmatpush1.msra.mxu0 0.0
      %550 = vmatprep.subr.mxu0 0.0
      %551 = vmatpush1.msra.mxu0 0.0
      %552 = vmatprep.subr.mxu0 0.0
      %553 = vmatpush1.msra.mxu0 0.0
      %554 = vmatprep.subr.mxu0 0.0
      %555 = vmatpush1.msra.mxu0 0.0
      %556 = vmatprep.mubr.f32.mxu0 0.0
      %557 = vmatmul.mubr.f32.gmra.mrb[0].mxu0 %v441
      %v558 = vpop.f32.mrb[0].mxu0
      %v559 = vadd.f32 1e-06, %v558
      %v560 = vpop.f32.mrb[0].mxu0
      %561 = vmatprep.mubr.f32.mxu0 0.0
      %562 = vmatmul.mubr.f32.gmra.mrb[0].mxu0 %v444
      %v563 = vpop.f32.mrb[0].mxu0
      %v564 = vadd.f32 1e-06, %v563
      %v565 = vpop.f32.mrb[0].mxu0
      %566 = vmatprep.mubr.f32.mxu0 0.0
      %567 = vmatmul.mubr.f32.gmra.mrb[0].mxu0 %v447
      %v568 = vpop.f32.mrb[0].mxu0
      %v569 = vadd.f32 1e-06, %v568
      %v570 = vpop.f32.mrb[0].mxu0
      %571 = vmatprep.mubr.f32.mxu0 0.0
      %572 = vmatmul.mubr.f32.gmra.mrb[0].mxu0 %v450
      %v573 = vpop.f32.mrb[0].mxu0
      %v574 = vadd.f32 1e-06, %v573
      %v575 = vpop.f32.mrb[0].mxu0
      %576 = vmatprep.mubr.f32.mxu0 0.0
      %577 = vmatmul.mubr.f32.gmra.mrb[0].mxu0 %v453
      %v578 = vpop.f32.mrb[0].mxu0
      %v579 = vadd.f32 1e-06, %v578
      %v580 = vpop.f32.mrb[0].mxu0
      %581 = vmatprep.mubr.f32.mxu0 0.0
      %582 = vmatmul.mubr.f32.gmra.mrb[0].mxu0 %v456
      %v583 = vpop.f32.mrb[0].mxu0
      %v584 = vadd.f32 1e-06, %v583
      %v585 = vpop.f32.mrb[0].mxu0
      %586 = vmatprep.mubr.f32.mxu0 0.0
      %587 = vmatmul.mubr.f32.gmra.mrb[0].mxu0 %v459
      %v588 = vpop.f32.mrb[0].mxu0
      %v589 = vadd.f32 1e-06, %v588
      %v590 = vpop.f32.mrb[0].mxu0
      %591 = vmatprep.mubr.f32.mxu0 0.0
      %592 = vmatmul.mubr.f32.gmra.mrb[0].mxu0 %v462
      %v593 = vpop.f32.mrb[0].mxu0
      %v594 = vadd.f32 1e-06, %v593
      %v595 = vpop.f32.mrb[0].mxu0
      %596 = vmatprep.mubr.f32.mxu0 0.0
      %597 = vmatmul.mubr.f32.gmra.mrb[0].mxu0 %v465
      %v598 = vpop.f32.mrb[0].mxu0
      %v599 = vadd.f32 1e-06, %v598
      %v600 = vpop.f32.mrb[0].mxu0
      %601 = vmatprep.mubr.f32.mxu0 0.0
      %602 = vmatmul.mubr.f32.gmra.mrb[0].mxu0 %v468
      %v603 = vpop.f32.mrb[0].mxu0
      %v604 = vadd.f32 1e-06, %v603
      %v605 = vpop.f32.mrb[0].mxu0
      %606 = vmatprep.mubr.f32.mxu0 0.0
      %607 = vmatmul.mubr.f32.gmra.mrb[0].mxu0 %v471
      %v608 = vpop.f32.mrb[0].mxu0
      %v609 = vadd.f32 1e-06, %v608
      %v610 = vpop.f32.mrb[0].mxu0
      %611 = vmatprep.mubr.f32.mxu0 0.0
      %612 = vmatmul.mubr.f32.gmra.mrb[0].mxu0 %v474
      %v613 = vpop.f32.mrb[0].mxu0
      %v614 = vadd.f32 1e-06, %v613
      %v615 = vpop.f32.mrb[0].mxu0
      %616 = vmatprep.mubr.f32.mxu0 0.0
      %617 = vmatmul.mubr.f32.gmra.mrb[0].mxu0 %v477
      %v618 = vpop.f32.mrb[0].mxu0
      %v619 = vadd.f32 1e-06, %v618
      %v620 = vpop.f32.mrb[0].mxu0
      %621 = vmatprep.mubr.f32.mxu0 0.0
      %622 = vmatmul.mubr.f32.gmra.mrb[0].mxu0 %v480
      %v623 = vpop.f32.mrb[0].mxu0
      %v624 = vadd.f32 1e-06, %v623
      %v625 = vpop.f32.mrb[0].mxu0
      %626 = vmatprep.mubr.f32.mxu0 0.0
      %627 = vmatmul.mubr.f32.gmra.mrb[0].mxu0 %v483
      %v628 = vpop.f32.mrb[0].mxu0
      %v629 = vadd.f32 1e-06, %v628
      %v630 = vpop.f32.mrb[0].mxu0
      %631 = vmatprep.mubr.f32.mxu0 0.0
      %632 = vmatmul.mubr.f32.gmra.mrb[0].mxu0 %v486
      %v633 = vpop.f32.mrb[0].mxu0
      %v634 = vadd.f32 1e-06, %v633
      %v635 = vpop.f32.mrb[0].mxu0
      %636 = vdwg.mxu0
      %v637 = vrcp.pop %v559
      %v638 = vmul.f32 %v311, %v637
      %v639 = vrcp.pop %v564
      %v640 = vmul.f32 %v312, %v639
      %v641 = vrcp.pop %v569
      %v642 = vmul.f32 %v313, %v641
      %v643 = vrcp.pop %v574
      %v644 = vmul.f32 %v314, %v643
      %v645 = vrcp.pop %v579
      %v646 = vmul.f32 %v315, %v645
      %v647 = vrcp.pop %v584
      %v648 = vmul.f32 %v316, %v647
      %v649 = vrcp.pop %v589
      %v650 = vmul.f32 %v317, %v649
      %v651 = vrcp.pop %v594
      %v652 = vmul.f32 %v318, %v651
      %v653 = vrcp.pop %v599
      %v654 = vmul.f32 %v319, %v653
      %v655 = vrcp.pop %v604
      %v656 = vmul.f32 %v320, %v655
      %v657 = vrcp.pop %v609
      %v658 = vmul.f32 %v321, %v657
      %v659 = vrcp.pop %v614
      %v660 = vmul.f32 %v322, %v659
      %v661 = vrcp.pop %v619
      %v662 = vmul.f32 %v323, %v661
      %v663 = vrcp.pop %v624
      %v664 = vmul.f32 %v324, %v663
      %v665 = vrcp.pop %v629
      %v666 = vmul.f32 %v325, %v665
      %v667 = vrcp.pop %v634
      %v668 = vmul.f32 %v326, %v667
      %v669 = vmax.f32 %v638, -1.0
      %v670 = vmax.f32 %v640, -1.0
      %v671 = vmax.f32 %v642, -1.0
      %v672 = vmax.f32 %v644, -1.0
      %v673 = vmax.f32 %v646, -1.0
      %v674 = vmax.f32 %v648, -1.0
      %v675 = vmax.f32 %v650, -1.0
      %v676 = vmax.f32 %v652, -1.0
      %v677 = vmax.f32 %v654, -1.0
      %v678 = vmax.f32 %v656, -1.0
      %v679 = vmax.f32 %v658, -1.0
      %v680 = vmax.f32 %v660, -1.0
      %v681 = vmax.f32 %v662, -1.0
      %v682 = vmax.f32 %v664, -1.0
      %v683 = vmax.f32 %v666, -1.0
      %v684 = vmax.f32 %v668, -1.0
      %v685 = vmin.f32 %v669, 1.0
      %v686 = vmin.f32 %v670, 1.0
      %v687 = vmin.f32 %v671, 1.0
      %v688 = vmin.f32 %v672, 1.0
      %v689 = vmin.f32 %v673, 1.0
      %v690 = vmin.f32 %v674, 1.0
      %v691 = vmin.f32 %v675, 1.0
      %v692 = vmin.f32 %v676, 1.0
      %v693 = vmin.f32 %v677, 1.0
      %v694 = vmin.f32 %v678, 1.0
      %v695 = vmin.f32 %v679, 1.0
      %v696 = vmin.f32 %v680, 1.0
      %v697 = vmin.f32 %v681, 1.0
      %v698 = vmin.f32 %v682, 1.0
      %v699 = vmin.f32 %v683, 1.0
      %v700 = vmin.f32 %v684, 1.0
      %v701 = vand.u32 2147483647, %v685
      %v702 = vand.u32 2147483647, %v686
      %v703 = vand.u32 2147483647, %v687
      %v704 = vand.u32 2147483647, %v688
      %v705 = vand.u32 2147483647, %v689
      %v706 = vand.u32 2147483647, %v690
      %v707 = vand.u32 2147483647, %v691
      %v708 = vand.u32 2147483647, %v692
      %v709 = vand.u32 2147483647, %v693
      %v710 = vand.u32 2147483647, %v694
      %v711 = vand.u32 2147483647, %v695
      %v712 = vand.u32 2147483647, %v696
      %v713 = vand.u32 2147483647, %v697
      %v714 = vand.u32 2147483647, %v698
      %v715 = vand.u32 2147483647, %v699
      %v716 = vand.u32 2147483647, %v700
      %v717 = vmul.f32 %v701, -0.0012624911
      %v718 = vmul.f32 %v702, -0.0012624911
      %v719 = vmul.f32 %v703, -0.0012624911
      %v720 = vmul.f32 %v704, -0.0012624911
      %v721 = vmul.f32 %v705, -0.0012624911
      %v722 = vmul.f32 %v706, -0.0012624911
      %v723 = vmul.f32 %v707, -0.0012624911
      %v724 = vmul.f32 %v708, -0.0012624911
      %v725 = vmul.f32 %v709, -0.0012624911
      %v726 = vmul.f32 %v710, -0.0012624911
      %v727 = vmul.f32 %v711, -0.0012624911
      %v728 = vmul.f32 %v712, -0.0012624911
      %v729 = vmul.f32 %v713, -0.0012624911
      %v730 = vmul.f32 %v714, -0.0012624911
      %v731 = vmul.f32 %v715, -0.0012624911
      %v732 = vmul.f32 %v716, -0.0012624911
      %v733 = vadd.f32 %v717, 0.00667009
      %v734 = vadd.f32 %v718, 0.00667009
      %v735 = vadd.f32 %v719, 0.00667009
      %v736 = vadd.f32 %v720, 0.00667009
      %v737 = vadd.f32 %v721, 0.00667009
      %v738 = vadd.f32 %v722, 0.00667009
      %v739 = vadd.f32 %v723, 0.00667009
      %v740 = vadd.f32 %v724, 0.00667009
      %v741 = vadd.f32 %v725, 0.00667009
      %v742 = vadd.f32 %v726, 0.00667009
      %v743 = vadd.f32 %v727, 0.00667009
      %v744 = vadd.f32 %v728, 0.00667009
      %v745 = vadd.f32 %v729, 0.00667009
      %v746 = vadd.f32 %v730, 0.00667009
      %v747 = vadd.f32 %v731, 0.00667009
      %v748 = vadd.f32 %v732, 0.00667009
      %v749 = vmul.f32 %v733, %v701
      %v750 = vmul.f32 %v734, %v702
      %v751 = vmul.f32 %v735, %v703
      %v752 = vmul.f32 %v736, %v704
      %v753 = vmul.f32 %v737, %v705
      %v754 = vmul.f32 %v738, %v706
      %v755 = vmul.f32 %v739, %v707
      %v756 = vmul.f32 %v740, %v708
      %v757 = vmul.f32 %v741, %v709
      %v758 = vmul.f32 %v742, %v710
      %v759 = vmul.f32 %v743, %v711
      %v760 = vmul.f32 %v744, %v712
      %v761 = vmul.f32 %v745, %v713
      %v762 = vmul.f32 %v746, %v714
      %v763 = vmul.f32 %v747, %v715
      %v764 = vmul.f32 %v748, %v716
      %v765 = vadd.f32 %v749, -0.017088126
      %v766 = vadd.f32 %v750, -0.017088126
      %v767 = vadd.f32 %v751, -0.017088126
      %v768 = vadd.f32 %v752, -0.017088126
      %v769 = vadd.f32 %v753, -0.017088126
      %v770 = vadd.f32 %v754, -0.017088126
      %v771 = vadd.f32 %v755, -0.017088126
      %v772 = vadd.f32 %v756, -0.017088126
      %v773 = vadd.f32 %v757, -0.017088126
      %v774 = vadd.f32 %v758, -0.017088126
      %v775 = vadd.f32 %v759, -0.017088126
      %v776 = vadd.f32 %v760, -0.017088126
      %v777 = vadd.f32 %v761, -0.017088126
      %v778 = vadd.f32 %v762, -0.017088126
      %v779 = vadd.f32 %v763, -0.017088126
      %v780 = vadd.f32 %v764, -0.017088126
      %v781 = vmul.f32 %v765, %v701
      %v782 = vmul.f32 %v766, %v702
      %v783 = vmul.f32 %v767, %v703
      %v784 = vmul.f32 %v768, %v704
      %v785 = vmul.f32 %v769, %v705
      %v786 = vmul.f32 %v770, %v706
      %v787 = vmul.f32 %v771, %v707
      %v788 = vmul.f32 %v772, %v708
      %v789 = vmul.f32 %v773, %v709
      %v790 = vmul.f32 %v774, %v710
      %v791 = vmul.f32 %v775, %v711
      %v792 = vmul.f32 %v776, %v712
      %v793 = vmul.f32 %v777, %v713
      %v794 = vmul.f32 %v778, %v714
      %v795 = vmul.f32 %v779, %v715
      %v796 = vmul.f32 %v780, %v716
      %v797 = vadd.f32 %v781, 0.03089188
      %v798 = vadd.f32 %v782, 0.03089188
      %v799 = vadd.f32 %v783, 0.03089188
      %v800 = vadd.f32 %v784, 0.03089188
      %v801 = vadd.f32 %v785, 0.03089188
      %v802 = vadd.f32 %v786, 0.03089188
      %v803 = vadd.f32 %v787, 0.03089188
      %v804 = vadd.f32 %v788, 0.03089188
      %v805 = vadd.f32 %v789, 0.03089188
      %v806 = vadd.f32 %v790, 0.03089188
      %v807 = vadd.f32 %v791, 0.03089188
      %v808 = vadd.f32 %v792, 0.03089188
      %v809 = vadd.f32 %v793, 0.03089188
      %v810 = vadd.f32 %v794, 0.03089188
      %v811 = vadd.f32 %v795, 0.03089188
      %v812 = vadd.f32 %v796, 0.03089188
      %v813 = vmul.f32 %v797, %v701
      %v814 = vmul.f32 %v798, %v702
      %v815 = vmul.f32 %v799, %v703
      %v816 = vmul.f32 %v800, %v704
      %v817 = vmul.f32 %v801, %v705
      %v818 = vmul.f32 %v802, %v706
      %v819 = vmul.f32 %v803, %v707
      %v820 = vmul.f32 %v804, %v708
      %v821 = vmul.f32 %v805, %v709
      %v822 = vmul.f32 %v806, %v710
      %v823 = vmul.f32 %v807, %v711
      %v824 = vmul.f32 %v808, %v712
      %v825 = vmul.f32 %v809, %v713
      %v826 = vmul.f32 %v810, %v714
      %v827 = vmul.f32 %v811, %v715
      %v828 = vmul.f32 %v812, %v716
      %v829 = vadd.f32 %v813, -0.050174303
      %v830 = vadd.f32 %v814, -0.050174303
      %v831 = vadd.f32 %v815, -0.050174303
      %v832 = vadd.f32 %v816, -0.050174303
      %v833 = vadd.f32 %v817, -0.050174303
      %v834 = vadd.f32 %v818, -0.050174303
      %v835 = vadd.f32 %v819, -0.050174303
      %v836 = vadd.f32 %v820, -0.050174303
      %v837 = vadd.f32 %v821, -0.050174303
      %v838 = vadd.f32 %v822, -0.050174303
      %v839 = vadd.f32 %v823, -0.050174303
      %v840 = vadd.f32 %v824, -0.050174303
      %v841 = vadd.f32 %v825, -0.050174303
      %v842 = vadd.f32 %v826, -0.050174303
      %v843 = vadd.f32 %v827, -0.050174303
      %v844 = vadd.f32 %v828, -0.050174303
      %v845 = vmul.f32 %v829, %v701
      %v846 = vmul.f32 %v830, %v702
      %v847 = vmul.f32 %v831, %v703
      %v848 = vmul.f32 %v832, %v704
      %v849 = vmul.f32 %v833, %v705
      %v850 = vmul.f32 %v834, %v706
      %v851 = vmul.f32 %v835, %v707
      %v852 = vmul.f32 %v836, %v708
      %v853 = vmul.f32 %v837, %v709
      %v854 = vmul.f32 %v838, %v710
      %v855 = vmul.f32 %v839, %v711
      %v856 = vmul.f32 %v840, %v712
      %v857 = vmul.f32 %v841, %v713
      %v858 = vmul.f32 %v842, %v714
      %v859 = vmul.f32 %v843, %v715
      %v860 = vmul.f32 %v844, %v716
      %v861 = vadd.f32 %v845, 0.08897899
      %v862 = vadd.f32 %v846, 0.08897899
      %v863 = vadd.f32 %v847, 0.08897899
      %v864 = vadd.f32 %v848, 0.08897899
      %v865 = vadd.f32 %v849, 0.08897899
      %v866 = vadd.f32 %v850, 0.08897899
      %v867 = vadd.f32 %v851, 0.08897899
      %v868 = vadd.f32 %v852, 0.08897899
      %v869 = vadd.f32 %v853, 0.08897899
      %v870 = vadd.f32 %v854, 0.08897899
      %v871 = vadd.f32 %v855, 0.08897899
      %v872 = vadd.f32 %v856, 0.08897899
      %v873 = vadd.f32 %v857, 0.08897899
      %v874 = vadd.f32 %v858, 0.08897899
      %v875 = vadd.f32 %v859, 0.08897899
      %v876 = vadd.f32 %v860, 0.08897899
      %v877 = vmul.f32 %v861, %v701
      %v878 = vmul.f32 %v862, %v702
      %v879 = vmul.f32 %v863, %v703
      %v880 = vmul.f32 %v864, %v704
      %v881 = vmul.f32 %v865, %v705
      %v882 = vmul.f32 %v866, %v706
      %v883 = vmul.f32 %v867, %v707
      %v884 = vmul.f32 %v868, %v708
      %v885 = vmul.f32 %v869, %v709
      %v886 = vmul.f32 %v870, %v710
      %v887 = vmul.f32 %v871, %v711
      %v888 = vmul.f32 %v872, %v712
      %v889 = vmul.f32 %v873, %v713
      %v890 = vmul.f32 %v874, %v714
      %v891 = vmul.f32 %v875, %v715
      %v892 = vmul.f32 %v876, %v716
      %v893 = vadd.f32 %v877, -0.2145988
      %v894 = vadd.f32 %v878, -0.2145988
      %v895 = vadd.f32 %v879, -0.2145988
      %v896 = vadd.f32 %v880, -0.2145988
      %v897 = vadd.f32 %v881, -0.2145988
      %v898 = vadd.f32 %v882, -0.2145988
      %v899 = vadd.f32 %v883, -0.2145988
      %v900 = vadd.f32 %v884, -0.2145988
      %v901 = vadd.f32 %v885, -0.2145988
      %v902 = vadd.f32 %v886, -0.2145988
      %v903 = vadd.f32 %v887, -0.2145988
      %v904 = vadd.f32 %v888, -0.2145988
      %v905 = vadd.f32 %v889, -0.2145988
      %v906 = vadd.f32 %v890, -0.2145988
      %v907 = vadd.f32 %v891, -0.2145988
      %v908 = vadd.f32 %v892, -0.2145988
      %v909 = vmul.f32 %v893, %v701
      %v910 = vmul.f32 %v894, %v702
      %v911 = vmul.f32 %v895, %v703
      %v912 = vmul.f32 %v896, %v704
      %v913 = vmul.f32 %v897, %v705
      %v914 = vmul.f32 %v898, %v706
      %v915 = vmul.f32 %v899, %v707
      %v916 = vmul.f32 %v900, %v708
      %v917 = vmul.f32 %v901, %v709
      %v918 = vmul.f32 %v902, %v710
      %v919 = vmul.f32 %v903, %v711
      %v920 = vmul.f32 %v904, %v712
      %v921 = vmul.f32 %v905, %v713
      %v922 = vmul.f32 %v906, %v714
      %v923 = vmul.f32 %v907, %v715
      %v924 = vmul.f32 %v908, %v716
      %v925 = vadd.f32 %v909, 1.5707963
      %v926 = vadd.f32 %v910, 1.5707963
      %v927 = vadd.f32 %v911, 1.5707963
      %v928 = vadd.f32 %v912, 1.5707963
      %v929 = vadd.f32 %v913, 1.5707963
      %v930 = vadd.f32 %v914, 1.5707963
      %v931 = vadd.f32 %v915, 1.5707963
      %v932 = vadd.f32 %v916, 1.5707963
      %v933 = vadd.f32 %v917, 1.5707963
      %v934 = vadd.f32 %v918, 1.5707963
      %v935 = vadd.f32 %v919, 1.5707963
      %v936 = vadd.f32 %v920, 1.5707963
      %v937 = vadd.f32 %v921, 1.5707963
      %v938 = vadd.f32 %v922, 1.5707963
      %v939 = vadd.f32 %v923, 1.5707963
      %v940 = vadd.f32 %v924, 1.5707963
      %v941 = vsub.f32 1.0, %v701
      %v942 = vsub.f32 1.0, %v702
      %v943 = vsub.f32 1.0, %v703
      %v944 = vsub.f32 1.0, %v704
      %v945 = vsub.f32 1.0, %v705
      %v946 = vsub.f32 1.0, %v706
      %v947 = vsub.f32 1.0, %v707
      %v948 = vsub.f32 1.0, %v708
      %v949 = vsub.f32 1.0, %v709
      %v950 = vsub.f32 1.0, %v710
      %v951 = vsub.f32 1.0, %v711
      %v952 = vsub.f32 1.0, %v712
      %v953 = vsub.f32 1.0, %v713
      %v954 = vsub.f32 1.0, %v714
      %v955 = vsub.f32 1.0, %v715
      %v956 = vsub.f32 1.0, %v716
      %v957 = vmax.f32 %v941, 0.0
      %v958 = vmax.f32 %v942, 0.0
      %v959 = vmax.f32 %v943, 0.0
      %v960 = vmax.f32 %v944, 0.0
      %v961 = vmax.f32 %v945, 0.0
      %v962 = vmax.f32 %v946, 0.0
      %v963 = vmax.f32 %v947, 0.0
      %v964 = vmax.f32 %v948, 0.0
      %v965 = vmax.f32 %v949, 0.0
      %v966 = vmax.f32 %v950, 0.0
      %v967 = vmax.f32 %v951, 0.0
      %v968 = vmax.f32 %v952, 0.0
      %v969 = vmax.f32 %v953, 0.0
      %v970 = vmax.f32 %v954, 0.0
      %v971 = vmax.f32 %v955, 0.0
      %v972 = vmax.f32 %v956, 0.0
      %v973 = vrsqrt.pop %v957
      %v974 = vmul.f32 %v957, %v973
      %vm975 = vcmp.eq.f32.partialorder %v957, inf
      %v976 = vsel %vm975, %v957, %v974
      %vm977 = vcmp.eq.f32.partialorder %v957, 0.0
      %v978 = vand.u32 %v957, 2147483648
      %v979 = vsel %vm977, %v978, %v976
      %v980 = vrsqrt.pop %v958
      %v981 = vmul.f32 %v958, %v980
      %vm982 = vcmp.eq.f32.partialorder %v958, inf
      %v983 = vsel %vm982, %v958, %v981
      %vm984 = vcmp.eq.f32.partialorder %v958, 0.0
      %v985 = vand.u32 %v958, 2147483648
      %v986 = vsel %vm984, %v985, %v983
      %v987 = vrsqrt.pop %v959
      %v988 = vmul.f32 %v959, %v987
      %vm989 = vcmp.eq.f32.partialorder %v959, inf
      %v990 = vsel %vm989, %v959, %v988
      %vm991 = vcmp.eq.f32.partialorder %v959, 0.0
      %v992 = vand.u32 %v959, 2147483648
      %v993 = vsel %vm991, %v992, %v990
      %v994 = vrsqrt.pop %v960
      %v995 = vmul.f32 %v960, %v994
      %vm996 = vcmp.eq.f32.partialorder %v960, inf
      %v997 = vsel %vm996, %v960, %v995
      %vm998 = vcmp.eq.f32.partialorder %v960, 0.0
      %v999 = vand.u32 %v960, 2147483648
      %v1000 = vsel %vm998, %v999, %v997
      %v1001 = vrsqrt.pop %v961
      %v1002 = vmul.f32 %v961, %v1001
      %vm1003 = vcmp.eq.f32.partialorder %v961, inf
      %v1004 = vsel %vm1003, %v961, %v1002
      %vm1005 = vcmp.eq.f32.partialorder %v961, 0.0
      %v1006 = vand.u32 %v961, 2147483648
      %v1007 = vsel %vm1005, %v1006, %v1004
      %v1008 = vrsqrt.pop %v962
      %v1009 = vmul.f32 %v962, %v1008
      %vm1010 = vcmp.eq.f32.partialorder %v962, inf
      %v1011 = vsel %vm1010, %v962, %v1009
      %vm1012 = vcmp.eq.f32.partialorder %v962, 0.0
      %v1013 = vand.u32 %v962, 2147483648
      %v1014 = vsel %vm1012, %v1013, %v1011
      %v1015 = vrsqrt.pop %v963
      %v1016 = vmul.f32 %v963, %v1015
      %vm1017 = vcmp.eq.f32.partialorder %v963, inf
      %v1018 = vsel %vm1017, %v963, %v1016
      %vm1019 = vcmp.eq.f32.partialorder %v963, 0.0
      %v1020 = vand.u32 %v963, 2147483648
      %v1021 = vsel %vm1019, %v1020, %v1018
      %v1022 = vrsqrt.pop %v964
      %v1023 = vmul.f32 %v964, %v1022
      %vm1024 = vcmp.eq.f32.partialorder %v964, inf
      %v1025 = vsel %vm1024, %v964, %v1023
      %vm1026 = vcmp.eq.f32.partialorder %v964, 0.0
      %v1027 = vand.u32 %v964, 2147483648
      %v1028 = vsel %vm1026, %v1027, %v1025
      %v1029 = vrsqrt.pop %v965
      %v1030 = vmul.f32 %v965, %v1029
      %vm1031 = vcmp.eq.f32.partialorder %v965, inf
      %v1032 = vsel %vm1031, %v965, %v1030
      %vm1033 = vcmp.eq.f32.partialorder %v965, 0.0
      %v1034 = vand.u32 %v965, 2147483648
      %v1035 = vsel %vm1033, %v1034, %v1032
      %v1036 = vrsqrt.pop %v966
      %v1037 = vmul.f32 %v966, %v1036
      %vm1038 = vcmp.eq.f32.partialorder %v966, inf
      %v1039 = vsel %vm1038, %v966, %v1037
      %vm1040 = vcmp.eq.f32.partialorder %v966, 0.0
      %v1041 = vand.u32 %v966, 2147483648
      %v1042 = vsel %vm1040, %v1041, %v1039
      %v1043 = vrsqrt.pop %v967
      %v1044 = vmul.f32 %v967, %v1043
      %vm1045 = vcmp.eq.f32.partialorder %v967, inf
      %v1046 = vsel %vm1045, %v967, %v1044
      %vm1047 = vcmp.eq.f32.partialorder %v967, 0.0
      %v1048 = vand.u32 %v967, 2147483648
      %v1049 = vsel %vm1047, %v1048, %v1046
      %v1050 = vrsqrt.pop %v968
      %v1051 = vmul.f32 %v968, %v1050
      %vm1052 = vcmp.eq.f32.partialorder %v968, inf
      %v1053 = vsel %vm1052, %v968, %v1051
      %vm1054 = vcmp.eq.f32.partialorder %v968, 0.0
      %v1055 = vand.u32 %v968, 2147483648
      %v1056 = vsel %vm1054, %v1055, %v1053
      %v1057 = vrsqrt.pop %v969
      %v1058 = vmul.f32 %v969, %v1057
      %vm1059 = vcmp.eq.f32.partialorder %v969, inf
      %v1060 = vsel %vm1059, %v969, %v1058
      %vm1061 = vcmp.eq.f32.partialorder %v969, 0.0
      %v1062 = vand.u32 %v969, 2147483648
      %v1063 = vsel %vm1061, %v1062, %v1060
      %v1064 = vrsqrt.pop %v970
      %v1065 = vmul.f32 %v970, %v1064
      %vm1066 = vcmp.eq.f32.partialorder %v970, inf
      %v1067 = vsel %vm1066, %v970, %v1065
      %vm1068 = vcmp.eq.f32.partialorder %v970, 0.0
      %v1069 = vand.u32 %v970, 2147483648
      %v1070 = vsel %vm1068, %v1069, %v1067
      %v1071 = vrsqrt.pop %v971
      %v1072 = vmul.f32 %v971, %v1071
      %vm1073 = vcmp.eq.f32.partialorder %v971, inf
      %v1074 = vsel %vm1073, %v971, %v1072
      %vm1075 = vcmp.eq.f32.partialorder %v971, 0.0
      %v1076 = vand.u32 %v971, 2147483648
      %v1077 = vsel %vm1075, %v1076, %v1074
      %v1078 = vrsqrt.pop %v972
      %v1079 = vmul.f32 %v972, %v1078
      %vm1080 = vcmp.eq.f32.partialorder %v972, inf
      %v1081 = vsel %vm1080, %v972, %v1079
      %vm1082 = vcmp.eq.f32.partialorder %v972, 0.0
      %v1083 = vand.u32 %v972, 2147483648
      %v1084 = vsel %vm1082, %v1083, %v1081
      %v1085 = vmul.f32 %v979, %v925
      %v1086 = vmul.f32 %v986, %v926
      %v1087 = vmul.f32 %v993, %v927
      %v1088 = vmul.f32 %v1000, %v928
      %v1089 = vmul.f32 %v1007, %v929
      %v1090 = vmul.f32 %v1014, %v930
      %v1091 = vmul.f32 %v1021, %v931
      %v1092 = vmul.f32 %v1028, %v932
      %v1093 = vmul.f32 %v1035, %v933
      %v1094 = vmul.f32 %v1042, %v934
      %v1095 = vmul.f32 %v1049, %v935
      %v1096 = vmul.f32 %v1056, %v936
      %v1097 = vmul.f32 %v1063, %v937
      %v1098 = vmul.f32 %v1070, %v938
      %v1099 = vmul.f32 %v1077, %v939
      %v1100 = vmul.f32 %v1084, %v940
      %vm1101 = vcmp.lt.f32.partialorder %v685, 0.0
      %vm1102 = vcmp.lt.f32.partialorder %v686, 0.0
      %vm1103 = vcmp.lt.f32.partialorder %v687, 0.0
      %vm1104 = vcmp.lt.f32.partialorder %v688, 0.0
      %vm1105 = vcmp.lt.f32.partialorder %v689, 0.0
      %vm1106 = vcmp.lt.f32.partialorder %v690, 0.0
      %vm1107 = vcmp.lt.f32.partialorder %v691, 0.0
      %vm1108 = vcmp.lt.f32.partialorder %v692, 0.0
      %vm1109 = vcmp.lt.f32.partialorder %v693, 0.0
      %vm1110 = vcmp.lt.f32.partialorder %v694, 0.0
      %vm1111 = vcmp.lt.f32.partialorder %v695, 0.0
      %vm1112 = vcmp.lt.f32.partialorder %v696, 0.0
      %vm1113 = vcmp.lt.f32.partialorder %v697, 0.0
      %vm1114 = vcmp.lt.f32.partialorder %v698, 0.0
      %vm1115 = vcmp.lt.f32.partialorder %v699, 0.0
      %vm1116 = vcmp.lt.f32.partialorder %v700, 0.0
      %v1117 = vsub.f32 3.1415927, %v1085
      %v1118 = vsub.f32 3.1415927, %v1086
      %v1119 = vsub.f32 3.1415927, %v1087
      %v1120 = vsub.f32 3.1415927, %v1088
      %v1121 = vsub.f32 3.1415927, %v1089
      %v1122 = vsub.f32 3.1415927, %v1090
      %v1123 = vsub.f32 3.1415927, %v1091
      %v1124 = vsub.f32 3.1415927, %v1092
      %v1125 = vsub.f32 3.1415927, %v1093
      %v1126 = vsub.f32 3.1415927, %v1094
      %v1127 = vsub.f32 3.1415927, %v1095
      %v1128 = vsub.f32 3.1415927, %v1096
      %v1129 = vsub.f32 3.1415927, %v1097
      %v1130 = vsub.f32 3.1415927, %v1098
      %v1131 = vsub.f32 3.1415927, %v1099
      %v1132 = vsub.f32 3.1415927, %v1100
      %v1133 = vsel %vm1101, %v1117, %v1085
      %v1134 = vsel %vm1102, %v1118, %v1086
      %v1135 = vsel %vm1103, %v1119, %v1087
      %v1136 = vsel %vm1104, %v1120, %v1088
      %v1137 = vsel %vm1105, %v1121, %v1089
      %v1138 = vsel %vm1106, %v1122, %v1090
      %v1139 = vsel %vm1107, %v1123, %v1091
      %v1140 = vsel %vm1108, %v1124, %v1092
      %v1141 = vsel %vm1109, %v1125, %v1093
      %v1142 = vsel %vm1110, %v1126, %v1094
      %v1143 = vsel %vm1111, %v1127, %v1095
      %v1144 = vsel %vm1112, %v1128, %v1096
      %v1145 = vsel %vm1113, %v1129, %v1097
      %v1146 = vsel %vm1114, %v1130, %v1098
      %v1147 = vsel %vm1115, %v1131, %v1099
      %v1148 = vsel %vm1116, %v1132, %v1100
      %v1149 = vmul.f32 %v1133, 0.31830987
      %v1150 = vmul.f32 %v1134, 0.31830987
      %v1151 = vmul.f32 %v1135, 0.31830987
      %v1152 = vmul.f32 %v1136, 0.31830987
      %v1153 = vmul.f32 %v1137, 0.31830987
      %v1154 = vmul.f32 %v1138, 0.31830987
      %v1155 = vmul.f32 %v1139, 0.31830987
      %v1156 = vmul.f32 %v1140, 0.31830987
      %v1157 = vmul.f32 %v1141, 0.31830987
      %v1158 = vmul.f32 %v1142, 0.31830987
      %v1159 = vmul.f32 %v1143, 0.31830987
      %v1160 = vmul.f32 %v1144, 0.31830987
      %v1161 = vmul.f32 %v1145, 0.31830987
      %v1162 = vmul.f32 %v1146, 0.31830987
      %v1163 = vmul.f32 %v1147, 0.31830987
      %v1164 = vmul.f32 %v1148, 0.31830987
      %v1165 = vadd.f32 %v1149, 0.0001
      %v1166 = vadd.f32 %v1150, 0.0001
      %v1167 = vadd.f32 %v1151, 0.0001
      %v1168 = vadd.f32 %v1152, 0.0001
      %v1169 = vadd.f32 %v1153, 0.0001
      %v1170 = vadd.f32 %v1154, 0.0001
      %v1171 = vadd.f32 %v1155, 0.0001
      %v1172 = vadd.f32 %v1156, 0.0001
      %v1173 = vadd.f32 %v1157, 0.0001
      %v1174 = vadd.f32 %v1158, 0.0001
      %v1175 = vadd.f32 %v1159, 0.0001
      %v1176 = vadd.f32 %v1160, 0.0001
      %v1177 = vadd.f32 %v1161, 0.0001
      %v1178 = vadd.f32 %v1162, 0.0001
      %v1179 = vadd.f32 %v1163, 0.0001
      %v1180 = vadd.f32 %v1164, 0.0001
      %v1181 = vsub.f32 3.1415927, %v1133
      %v1182 = vsub.f32 3.1415927, %v1134
      %v1183 = vsub.f32 3.1415927, %v1135
      %v1184 = vsub.f32 3.1415927, %v1136
      %v1185 = vsub.f32 3.1415927, %v1137
      %v1186 = vsub.f32 3.1415927, %v1138
      %v1187 = vsub.f32 3.1415927, %v1139
      %v1188 = vsub.f32 3.1415927, %v1140
      %v1189 = vsub.f32 3.1415927, %v1141
      %v1190 = vsub.f32 3.1415927, %v1142
      %v1191 = vsub.f32 3.1415927, %v1143
      %v1192 = vsub.f32 3.1415927, %v1144
      %v1193 = vsub.f32 3.1415927, %v1145
      %v1194 = vsub.f32 3.1415927, %v1146
      %v1195 = vsub.f32 3.1415927, %v1147
      %v1196 = vsub.f32 3.1415927, %v1148
      %v1197 = vmul.f32 %v1181, 0.31830987
      %v1198 = vmul.f32 %v1182, 0.31830987
      %v1199 = vmul.f32 %v1183, 0.31830987
      %v1200 = vmul.f32 %v1184, 0.31830987
      %v1201 = vmul.f32 %v1185, 0.31830987
      %v1202 = vmul.f32 %v1186, 0.31830987
      %v1203 = vmul.f32 %v1187, 0.31830987
      %v1204 = vmul.f32 %v1188, 0.31830987
      %v1205 = vmul.f32 %v1189, 0.31830987
      %v1206 = vmul.f32 %v1190, 0.31830987
      %v1207 = vmul.f32 %v1191, 0.31830987
      %v1208 = vmul.f32 %v1192, 0.31830987
      %v1209 = vmul.f32 %v1193, 0.31830987
      %v1210 = vmul.f32 %v1194, 0.31830987
      %v1211 = vmul.f32 %v1195, 0.31830987
      %v1212 = vmul.f32 %v1196, 0.31830987
      %v1213 = vadd.f32 %v1197, 0.0001
      %v1214 = vadd.f32 %v1198, 0.0001
      %v1215 = vadd.f32 %v1199, 0.0001
      %v1216 = vadd.f32 %v1200, 0.0001
      %v1217 = vadd.f32 %v1201, 0.0001
      %v1218 = vadd.f32 %v1202, 0.0001
      %v1219 = vadd.f32 %v1203, 0.0001
      %v1220 = vadd.f32 %v1204, 0.0001
      %v1221 = vadd.f32 %v1205, 0.0001
      %v1222 = vadd.f32 %v1206, 0.0001
      %v1223 = vadd.f32 %v1207, 0.0001
      %v1224 = vadd.f32 %v1208, 0.0001
      %v1225 = vadd.f32 %v1209, 0.0001
      %v1226 = vadd.f32 %v1210, 0.0001
      %v1227 = vadd.f32 %v1211, 0.0001
      %v1228 = vadd.f32 %v1212, 0.0001
      %v1229 = vmul.f32 %v1165, %v1165
      %v1230 = vmul.f32 %v1166, %v1166
      %v1231 = vmul.f32 %v1167, %v1167
      %v1232 = vmul.f32 %v1168, %v1168
      %v1233 = vmul.f32 %v1169, %v1169
      %v1234 = vmul.f32 %v1170, %v1170
      %v1235 = vmul.f32 %v1171, %v1171
      %v1236 = vmul.f32 %v1172, %v1172
      %v1237 = vmul.f32 %v1173, %v1173
      %v1238 = vmul.f32 %v1174, %v1174
      %v1239 = vmul.f32 %v1175, %v1175
      %v1240 = vmul.f32 %v1176, %v1176
      %v1241 = vmul.f32 %v1177, %v1177
      %v1242 = vmul.f32 %v1178, %v1178
      %v1243 = vmul.f32 %v1179, %v1179
      %v1244 = vmul.f32 %v1180, %v1180
      %v1245 = vrcp.pop %v1229
      %v1246 = vmul.f32 1.0, %v1245
      %v1247 = vrcp.pop %v1230
      %v1248 = vmul.f32 1.0, %v1247
      %v1249 = vrcp.pop %v1231
      %v1250 = vmul.f32 1.0, %v1249
      %v1251 = vrcp.pop %v1232
      %v1252 = vmul.f32 1.0, %v1251
      %v1253 = vrcp.pop %v1233
      %v1254 = vmul.f32 1.0, %v1253
      %v1255 = vrcp.pop %v1234
      %v1256 = vmul.f32 1.0, %v1255
      %v1257 = vrcp.pop %v1235
      %v1258 = vmul.f32 1.0, %v1257
      %v1259 = vrcp.pop %v1236
      %v1260 = vmul.f32 1.0, %v1259
      %v1261 = vrcp.pop %v1237
      %v1262 = vmul.f32 1.0, %v1261
      %v1263 = vrcp.pop %v1238
      %v1264 = vmul.f32 1.0, %v1263
      %v1265 = vrcp.pop %v1239
      %v1266 = vmul.f32 1.0, %v1265
      %v1267 = vrcp.pop %v1240
      %v1268 = vmul.f32 1.0, %v1267
      %v1269 = vrcp.pop %v1241
      %v1270 = vmul.f32 1.0, %v1269
      %v1271 = vrcp.pop %v1242
      %v1272 = vmul.f32 1.0, %v1271
      %v1273 = vrcp.pop %v1243
      %v1274 = vmul.f32 1.0, %v1273
      %v1275 = vrcp.pop %v1244
      %v1276 = vmul.f32 1.0, %v1275
      %v1277 = vmul.f32 %v1213, %v1213
      %v1278 = vmul.f32 %v1214, %v1214
      %v1279 = vmul.f32 %v1215, %v1215
      %v1280 = vmul.f32 %v1216, %v1216
      %v1281 = vmul.f32 %v1217, %v1217
      %v1282 = vmul.f32 %v1218, %v1218
      %v1283 = vmul.f32 %v1219, %v1219
      %v1284 = vmul.f32 %v1220, %v1220
      %v1285 = vmul.f32 %v1221, %v1221
      %v1286 = vmul.f32 %v1222, %v1222
      %v1287 = vmul.f32 %v1223, %v1223
      %v1288 = vmul.f32 %v1224, %v1224
      %v1289 = vmul.f32 %v1225, %v1225
      %v1290 = vmul.f32 %v1226, %v1226
      %v1291 = vmul.f32 %v1227, %v1227
      %v1292 = vmul.f32 %v1228, %v1228
      %v1293 = vrcp.pop %v1277
      %v1294 = vmul.f32 1.0, %v1293
      %v1295 = vrcp.pop %v1278
      %v1296 = vmul.f32 1.0, %v1295
      %v1297 = vrcp.pop %v1279
      %v1298 = vmul.f32 1.0, %v1297
      %v1299 = vrcp.pop %v1280
      %v1300 = vmul.f32 1.0, %v1299
      %v1301 = vrcp.pop %v1281
      %v1302 = vmul.f32 1.0, %v1301
      %v1303 = vrcp.pop %v1282
      %v1304 = vmul.f32 1.0, %v1303
      %v1305 = vrcp.pop %v1283
      %v1306 = vmul.f32 1.0, %v1305
      %v1307 = vrcp.pop %v1284
      %v1308 = vmul.f32 1.0, %v1307
      %v1309 = vrcp.pop %v1285
      %v1310 = vmul.f32 1.0, %v1309
      %v1311 = vrcp.pop %v1286
      %v1312 = vmul.f32 1.0, %v1311
      %v1313 = vrcp.pop %v1287
      %v1314 = vmul.f32 1.0, %v1313
      %v1315 = vrcp.pop %v1288
      %v1316 = vmul.f32 1.0, %v1315
      %v1317 = vrcp.pop %v1289
      %v1318 = vmul.f32 1.0, %v1317
      %v1319 = vrcp.pop %v1290
      %v1320 = vmul.f32 1.0, %v1319
      %v1321 = vrcp.pop %v1291
      %v1322 = vmul.f32 1.0, %v1321
      %v1323 = vrcp.pop %v1292
      %v1324 = vmul.f32 1.0, %v1323
      %vm1325 = vcmp.lt.s32.totalorder %v328, 8
      %vm1326 = vcmp.lt.s32.totalorder %v329, 8
      %vm1327 = vcmp.lt.s32.totalorder %v330, 8
      %vm1328 = vcmp.lt.s32.totalorder %v331, 8
      %vm1329 = vcmp.lt.s32.totalorder %v332, 8
      %vm1330 = vcmp.lt.s32.totalorder %v333, 8
      %vm1331 = vcmp.lt.s32.totalorder %v334, 8
      %vm1332 = vcmp.lt.s32.totalorder %v335, 8
      %vm1333 = vcmp.lt.s32.totalorder %v336, 8
      %vm1334 = vcmp.lt.s32.totalorder %v337, 8
      %vm1335 = vcmp.lt.s32.totalorder %v338, 8
      %vm1336 = vcmp.lt.s32.totalorder %v339, 8
      %vm1337 = vcmp.lt.s32.totalorder %v340, 8
      %vm1338 = vcmp.lt.s32.totalorder %v341, 8
      %vm1339 = vcmp.lt.s32.totalorder %v342, 8
      %vm1340 = vcmp.lt.s32.totalorder %v343, 8
      %vm1341 = vcmp.lt.s32.totalorder %v345, 8
      %vm1342 = vmand %vm1325, %vm1341
      %vm1343 = vmand %vm1326, %vm1341
      %vm1344 = vmand %vm1327, %vm1341
      %vm1345 = vmand %vm1328, %vm1341
      %vm1346 = vmand %vm1329, %vm1341
      %vm1347 = vmand %vm1330, %vm1341
      %vm1348 = vmand %vm1331, %vm1341
      %vm1349 = vmand %vm1332, %vm1341
      %vm1350 = vmand %vm1333, %vm1341
      %vm1351 = vmand %vm1334, %vm1341
      %vm1352 = vmand %vm1335, %vm1341
      %vm1353 = vmand %vm1336, %vm1341
      %vm1354 = vmand %vm1337, %vm1341
      %vm1355 = vmand %vm1338, %vm1341
      %vm1356 = vmand %vm1339, %vm1341
      %vm1357 = vmand %vm1340, %vm1341
      %v1358 = vsub.s32 %v328, 1
      %v1359 = vsub.s32 %v329, 1
      %v1360 = vsub.s32 %v330, 1
      %v1361 = vsub.s32 %v331, 1
      %v1362 = vsub.s32 %v332, 1
      %v1363 = vsub.s32 %v333, 1
      %v1364 = vsub.s32 %v334, 1
      %v1365 = vsub.s32 %v335, 1
      %v1366 = vsub.s32 %v336, 1
      %v1367 = vsub.s32 %v337, 1
      %v1368 = vsub.s32 %v338, 1
      %v1369 = vsub.s32 %v339, 1
      %v1370 = vsub.s32 %v340, 1
      %v1371 = vsub.s32 %v341, 1
      %v1372 = vsub.s32 %v342, 1
      %v1373 = vsub.s32 %v343, 1
      %vm1374 = vcmp.lt.s32.totalorder %v345, %v1358
      %vm1375 = vcmp.lt.s32.totalorder %v345, %v1359
      %vm1376 = vcmp.lt.s32.totalorder %v345, %v1360
      %vm1377 = vcmp.lt.s32.totalorder %v345, %v1361
      %vm1378 = vcmp.lt.s32.totalorder %v345, %v1362
      %vm1379 = vcmp.lt.s32.totalorder %v345, %v1363
      %vm1380 = vcmp.lt.s32.totalorder %v345, %v1364
      %vm1381 = vcmp.lt.s32.totalorder %v345, %v1365
      %vm1382 = vcmp.lt.s32.totalorder %v345, %v1366
      %vm1383 = vcmp.lt.s32.totalorder %v345, %v1367
      %vm1384 = vcmp.lt.s32.totalorder %v345, %v1368
      %vm1385 = vcmp.lt.s32.totalorder %v345, %v1369
      %vm1386 = vcmp.lt.s32.totalorder %v345, %v1370
      %vm1387 = vcmp.lt.s32.totalorder %v345, %v1371
      %vm1388 = vcmp.lt.s32.totalorder %v345, %v1372
      %vm1389 = vcmp.lt.s32.totalorder %v345, %v1373
      %vm1390 = vmand %vm1342, %vm1374
      %vm1391 = vmand %vm1343, %vm1375
      %vm1392 = vmand %vm1344, %vm1376
      %vm1393 = vmand %vm1345, %vm1377
      %vm1394 = vmand %vm1346, %vm1378
      %vm1395 = vmand %vm1347, %vm1379
      %vm1396 = vmand %vm1348, %vm1380
      %vm1397 = vmand %vm1349, %vm1381
      %vm1398 = vmand %vm1350, %vm1382
      %vm1399 = vmand %vm1351, %vm1383
      %vm1400 = vmand %vm1352, %vm1384
      %vm1401 = vmand %vm1353, %vm1385
      %vm1402 = vmand %vm1354, %vm1386
      %vm1403 = vmand %vm1355, %vm1387
      %vm1404 = vmand %vm1356, %vm1388
      %vm1405 = vmand %vm1357, %vm1389
      %v1406 = vsel %vm1390, %v1246, 0.0
      %v1407 = vsel %vm1391, %v1248, 0.0
      %v1408 = vsel %vm1392, %v1250, 0.0
      %v1409 = vsel %vm1393, %v1252, 0.0
      %v1410 = vsel %vm1394, %v1254, 0.0
      %v1411 = vsel %vm1395, %v1256, 0.0
      %v1412 = vsel %vm1396, %v1258, 0.0
      %v1413 = vsel %vm1397, %v1260, 0.0
      %v1414 = vsel %vm1398, %v1262, 0.0
      %v1415 = vsel %vm1399, %v1264, 0.0
      %v1416 = vsel %vm1400, %v1266, 0.0
      %v1417 = vsel %vm1401, %v1268, 0.0
      %v1418 = vsel %vm1402, %v1270, 0.0
      %v1419 = vsel %vm1403, %v1272, 0.0
      %v1420 = vsel %vm1404, %v1274, 0.0
      %v1421 = vsel %vm1405, %v1276, 0.0
      %1422 = vadd.xlane.f32.xlu0 %v1406
      %v1423 = vpop.xlane.xlu0 %1422
      %1424 = vadd.xlane.f32.xlu0 %v1407
      %v1425 = vpop.xlane.xlu0 %1424
      %1426 = vadd.xlane.f32.xlu0 %v1408
      %v1427 = vpop.xlane.xlu0 %1426
      %1428 = vadd.xlane.f32.xlu0 %v1409
      %v1429 = vpop.xlane.xlu0 %1428
      %1430 = vadd.xlane.f32.xlu0 %v1410
      %v1431 = vpop.xlane.xlu0 %1430
      %1432 = vadd.xlane.f32.xlu0 %v1411
      %v1433 = vpop.xlane.xlu0 %1432
      %1434 = vadd.xlane.f32.xlu0 %v1412
      %v1435 = vpop.xlane.xlu0 %1434
      %1436 = vadd.xlane.f32.xlu0 %v1413
      %v1437 = vpop.xlane.xlu0 %1436
      %1438 = vadd.xlane.f32.xlu0 %v1414
      %v1439 = vpop.xlane.xlu0 %1438
      %1440 = vadd.xlane.f32.xlu0 %v1415
      %v1441 = vpop.xlane.xlu0 %1440
      %1442 = vadd.xlane.f32.xlu0 %v1416
      %v1443 = vpop.xlane.xlu0 %1442
      %1444 = vadd.xlane.f32.xlu0 %v1417
      %v1445 = vpop.xlane.xlu0 %1444
      %1446 = vadd.xlane.f32.xlu0 %v1418
      %v1447 = vpop.xlane.xlu0 %1446
      %1448 = vadd.xlane.f32.xlu0 %v1419
      %v1449 = vpop.xlane.xlu0 %1448
      %1450 = vadd.xlane.f32.xlu0 %v1420
      %v1451 = vpop.xlane.xlu0 %1450
      %1452 = vadd.xlane.f32.xlu0 %v1421
      %v1453 = vpop.xlane.xlu0 %1452
      %v1454 = vadd.f32 %v1423, %v1425
      %v1455 = vadd.f32 %v1454, %v1427
      %v1456 = vadd.f32 %v1455, %v1429
      %v1457 = vadd.f32 %v1456, %v1431
      %v1458 = vadd.f32 %v1457, %v1433
      %v1459 = vadd.f32 %v1458, %v1435
      %v1460 = vadd.f32 %v1459, %v1437
      %v1461 = vadd.f32 %v1460, %v1439
      %v1462 = vadd.f32 %v1461, %v1441
      %v1463 = vadd.f32 %v1462, %v1443
      %v1464 = vadd.f32 %v1463, %v1445
      %v1465 = vadd.f32 %v1464, %v1447
      %v1466 = vadd.f32 %v1465, %v1449
      %v1467 = vadd.f32 %v1466, %v1451
      %v1468 = vadd.f32 %v1467, %v1453
      %v1469 = vrot.slane %v1468, 4
      %v1470 = vadd.f32 %v1468, %v1469
      %v1471 = vrot.slane %v1470, 2
      %v1472 = vadd.f32 %v1470, %v1471
      %v1473 = vrot.slane %v1472, 1
      %v1474 = vadd.f32 %v1472, %v1473
      %v1475 = vsel %vm1342, %v1294, 0.0
      %v1476 = vsel %vm1343, %v1296, 0.0
      %v1477 = vsel %vm1344, %v1298, 0.0
      %v1478 = vsel %vm1345, %v1300, 0.0
      %v1479 = vsel %vm1346, %v1302, 0.0
      %v1480 = vsel %vm1347, %v1304, 0.0
      %v1481 = vsel %vm1348, %v1306, 0.0
      %v1482 = vsel %vm1349, %v1308, 0.0
      %v1483 = vsel %vm1350, %v1310, 0.0
      %v1484 = vsel %vm1351, %v1312, 0.0
      %v1485 = vsel %vm1352, %v1314, 0.0
      %v1486 = vsel %vm1353, %v1316, 0.0
      %v1487 = vsel %vm1354, %v1318, 0.0
      %v1488 = vsel %vm1355, %v1320, 0.0
      %v1489 = vsel %vm1356, %v1322, 0.0
      %v1490 = vsel %vm1357, %v1324, 0.0
      %1491 = vadd.xlane.f32.xlu0 %v1475
      %v1492 = vpop.xlane.xlu0 %1491
      %1493 = vadd.xlane.f32.xlu0 %v1476
      %v1494 = vpop.xlane.xlu0 %1493
      %1495 = vadd.xlane.f32.xlu0 %v1477
      %v1496 = vpop.xlane.xlu0 %1495
      %1497 = vadd.xlane.f32.xlu0 %v1478
      %v1498 = vpop.xlane.xlu0 %1497
      %1499 = vadd.xlane.f32.xlu0 %v1479
      %v1500 = vpop.xlane.xlu0 %1499
      %1501 = vadd.xlane.f32.xlu0 %v1480
      %v1502 = vpop.xlane.xlu0 %1501
      %1503 = vadd.xlane.f32.xlu0 %v1481
      %v1504 = vpop.xlane.xlu0 %1503
      %1505 = vadd.xlane.f32.xlu0 %v1482
      %v1506 = vpop.xlane.xlu0 %1505
      %1507 = vadd.xlane.f32.xlu0 %v1483
      %v1508 = vpop.xlane.xlu0 %1507
      %1509 = vadd.xlane.f32.xlu0 %v1484
      %v1510 = vpop.xlane.xlu0 %1509
      %1511 = vadd.xlane.f32.xlu0 %v1485
      %v1512 = vpop.xlane.xlu0 %1511
      %1513 = vadd.xlane.f32.xlu0 %v1486
      %v1514 = vpop.xlane.xlu0 %1513
      %1515 = vadd.xlane.f32.xlu0 %v1487
      %v1516 = vpop.xlane.xlu0 %1515
      %1517 = vadd.xlane.f32.xlu0 %v1488
      %v1518 = vpop.xlane.xlu0 %1517
      %1519 = vadd.xlane.f32.xlu0 %v1489
      %v1520 = vpop.xlane.xlu0 %1519
      %1521 = vadd.xlane.f32.xlu0 %v1490
      %v1522 = vpop.xlane.xlu0 %1521
      %v1523 = vadd.f32 %v1492, %v1494
      %v1524 = vadd.f32 %v1523, %v1496
      %v1525 = vadd.f32 %v1524, %v1498
      %v1526 = vadd.f32 %v1525, %v1500
      %v1527 = vadd.f32 %v1526, %v1502
      %v1528 = vadd.f32 %v1527, %v1504
      %v1529 = vadd.f32 %v1528, %v1506
      %v1530 = vadd.f32 %v1529, %v1508
      %v1531 = vadd.f32 %v1530, %v1510
      %v1532 = vadd.f32 %v1531, %v1512
      %v1533 = vadd.f32 %v1532, %v1514
      %v1534 = vadd.f32 %v1533, %v1516
      %v1535 = vadd.f32 %v1534, %v1518
      %v1536 = vadd.f32 %v1535, %v1520
      %v1537 = vadd.f32 %v1536, %v1522
      %v1538 = vrot.slane %v1537, 4
      %v1539 = vadd.f32 %v1537, %v1538
      %v1540 = vrot.slane %v1539, 2
      %v1541 = vadd.f32 %v1539, %v1540
      %v1542 = vrot.slane %v1541, 1
      %v1543 = vadd.f32 %v1541, %v1542
      %vm1544 = vcmp.eq.s32.totalorder %v328, 0
      %vm1545 = vcmp.eq.s32.totalorder %v329, 0
      %vm1546 = vcmp.eq.s32.totalorder %v330, 0
      %vm1547 = vcmp.eq.s32.totalorder %v331, 0
      %vm1548 = vcmp.eq.s32.totalorder %v332, 0
      %vm1549 = vcmp.eq.s32.totalorder %v333, 0
      %vm1550 = vcmp.eq.s32.totalorder %v334, 0
      %vm1551 = vcmp.eq.s32.totalorder %v335, 0
      %vm1552 = vcmp.eq.s32.totalorder %v336, 0
      %vm1553 = vcmp.eq.s32.totalorder %v337, 0
      %vm1554 = vcmp.eq.s32.totalorder %v338, 0
      %vm1555 = vcmp.eq.s32.totalorder %v339, 0
      %vm1556 = vcmp.eq.s32.totalorder %v340, 0
      %vm1557 = vcmp.eq.s32.totalorder %v341, 0
      %vm1558 = vcmp.eq.s32.totalorder %v342, 0
      %vm1559 = vcmp.eq.s32.totalorder %v343, 0
      %vm1560 = vcmp.eq.s32.totalorder %v345, 7
      %vm1561 = vmand %vm1544, %vm1560
      %vm1562 = vmand %vm1545, %vm1560
      %vm1563 = vmand %vm1546, %vm1560
      %vm1564 = vmand %vm1547, %vm1560
      %vm1565 = vmand %vm1548, %vm1560
      %vm1566 = vmand %vm1549, %vm1560
      %vm1567 = vmand %vm1550, %vm1560
      %vm1568 = vmand %vm1551, %vm1560
      %vm1569 = vmand %vm1552, %vm1560
      %vm1570 = vmand %vm1553, %vm1560
      %vm1571 = vmand %vm1554, %vm1560
      %vm1572 = vmand %vm1555, %vm1560
      %vm1573 = vmand %vm1556, %vm1560
      %vm1574 = vmand %vm1557, %vm1560
      %vm1575 = vmand %vm1558, %vm1560
      %vm1576 = vmand %vm1559, %vm1560
      %v1577 = vsel %vm1561, %v1294, 0.0
      %v1578 = vsel %vm1562, %v1296, 0.0
      %v1579 = vsel %vm1563, %v1298, 0.0
      %v1580 = vsel %vm1564, %v1300, 0.0
      %v1581 = vsel %vm1565, %v1302, 0.0
      %v1582 = vsel %vm1566, %v1304, 0.0
      %v1583 = vsel %vm1567, %v1306, 0.0
      %v1584 = vsel %vm1568, %v1308, 0.0
      %v1585 = vsel %vm1569, %v1310, 0.0
      %v1586 = vsel %vm1570, %v1312, 0.0
      %v1587 = vsel %vm1571, %v1314, 0.0
      %v1588 = vsel %vm1572, %v1316, 0.0
      %v1589 = vsel %vm1573, %v1318, 0.0
      %v1590 = vsel %vm1574, %v1320, 0.0
      %v1591 = vsel %vm1575, %v1322, 0.0
      %v1592 = vsel %vm1576, %v1324, 0.0
      %1593 = vadd.xlane.f32.xlu0 %v1577
      %v1594 = vpop.xlane.xlu0 %1593
      %1595 = vadd.xlane.f32.xlu0 %v1578
      %v1596 = vpop.xlane.xlu0 %1595
      %1597 = vadd.xlane.f32.xlu0 %v1579
      %v1598 = vpop.xlane.xlu0 %1597
      %1599 = vadd.xlane.f32.xlu0 %v1580
      %v1600 = vpop.xlane.xlu0 %1599
      %1601 = vadd.xlane.f32.xlu0 %v1581
      %v1602 = vpop.xlane.xlu0 %1601
      %1603 = vadd.xlane.f32.xlu0 %v1582
      %v1604 = vpop.xlane.xlu0 %1603
      %1605 = vadd.xlane.f32.xlu0 %v1583
      %v1606 = vpop.xlane.xlu0 %1605
      %1607 = vadd.xlane.f32.xlu0 %v1584
      %v1608 = vpop.xlane.xlu0 %1607
      %1609 = vadd.xlane.f32.xlu0 %v1585
      %v1610 = vpop.xlane.xlu0 %1609
      %1611 = vadd.xlane.f32.xlu0 %v1586
      %v1612 = vpop.xlane.xlu0 %1611
      %1613 = vadd.xlane.f32.xlu0 %v1587
      %v1614 = vpop.xlane.xlu0 %1613
      %1615 = vadd.xlane.f32.xlu0 %v1588
      %v1616 = vpop.xlane.xlu0 %1615
      %1617 = vadd.xlane.f32.xlu0 %v1589
      %v1618 = vpop.xlane.xlu0 %1617
      %1619 = vadd.xlane.f32.xlu0 %v1590
      %v1620 = vpop.xlane.xlu0 %1619
      %1621 = vadd.xlane.f32.xlu0 %v1591
      %v1622 = vpop.xlane.xlu0 %1621
      %1623 = vadd.xlane.f32.xlu0 %v1592
      %v1624 = vpop.xlane.xlu0 %1623
      %v1625 = vadd.f32 %v1594, %v1596
      %v1626 = vadd.f32 %v1625, %v1598
      %v1627 = vadd.f32 %v1626, %v1600
      %v1628 = vadd.f32 %v1627, %v1602
      %v1629 = vadd.f32 %v1628, %v1604
      %v1630 = vadd.f32 %v1629, %v1606
      %v1631 = vadd.f32 %v1630, %v1608
      %v1632 = vadd.f32 %v1631, %v1610
      %v1633 = vadd.f32 %v1632, %v1612
      %v1634 = vadd.f32 %v1633, %v1614
      %v1635 = vadd.f32 %v1634, %v1616
      %v1636 = vadd.f32 %v1635, %v1618
      %v1637 = vadd.f32 %v1636, %v1620
      %v1638 = vadd.f32 %v1637, %v1622
      %v1639 = vadd.f32 %v1638, %v1624
      %v1640 = vrot.slane %v1639, 4
      %v1641 = vadd.f32 %v1639, %v1640
      %v1642 = vrot.slane %v1641, 2
      %v1643 = vadd.f32 %v1641, %v1642
      %v1644 = vrot.slane %v1643, 1
      %v1645 = vadd.f32 %v1643, %v1644
      %v1646 = vmul.f32 %v1474, 2.0
      %v1647 = vadd.f32 %v1646, %v1543
      %v1648 = vsub.f32 %v1647, %v1645
      %v1649 = vmul.f32 %v1648, 0.00083333335
      %vm1650 = vcmask 0
      %1651 = vst.msk [vmem:[#allocation3] sm:$0x1] %vm1650, %v1649
    $region13: #{thomson_conv_forward.3} parent=1 // pred_fallthru
      _
    // Predicated region
    $region14: #{thomson_conv_forward.3} parent=1 // pred_check
      _
    $region15: #{thomson_conv_forward.3} parent=1 // pred_check_branch
      %1653 = sbr.rel (0) target = $region17
    $region16: #{thomson_conv_forward.3} parent=1 // pred_region
      %s1655 = ssub.s32 16, 16
      %1656 = vsyncadd [#allocation4], %s1655
      %s1658 = sshll.u32 [#allocation3], 4
      %s1659 = int_to_ptr.vmem [resolvable:$true] %s1658
      %1661 = dma.vmem_to_hbm [thread:$0]  %s1659, 16, %s1, [#allocation4]
    $region17: #{thomson_conv_forward.3} parent=1 // pred_fallthru
      _
    // Predicated region
    $region18: #{thomson_conv_forward.3} parent=1 // pred_check
      _
    $region19: #{thomson_conv_forward.3} parent=1 // pred_check_branch
      %1663 = sbr.rel (0) target = $region21
    $region20: #{thomson_conv_forward.3} parent=1 // pred_region
      %1664 = dma.done [#allocation4], 16
    $region21: #{thomson_conv_forward.3} parent=1 // pred_fallthru
      _
    %1665 = vsyncpa [#allocation4], 1

</llo_original>
